<compile_context>
chip_gen: v6e
topology: v6e:2x2x1
jax: 0.10.0
libtpu: 0.0.40
codegen_flags: <defaults>
</compile_context>

<pallas_src>
import jax
import jax.numpy as jnp
from jax.experimental import pallas as pl
from jax.experimental.pallas import tpu as pltpu


def mlp_kernel(x_ref,
               w1_ref, b1_ref,
               w2_ref, b2_ref,
               w3_ref, b3_ref,
               w4_ref, b4_ref,
               o_ref):
    # fc1 + ReLU  (low-precision operands on the MXU, f32 accumulation)
    h = jnp.dot(x_ref[...], w1_ref[...], preferred_element_type=jnp.float32)
    h = jnp.maximum(h + b1_ref[...], 0.0)
    # dropout(p=0.5) -> identity at inference
    # fc2 + ReLU
    h = jnp.dot(h.astype(w2_ref.dtype), w2_ref[...],
                preferred_element_type=jnp.float32)
    h = jnp.maximum(h + b2_ref[...], 0.0)
    # fc3 + ReLU
    h = jnp.dot(h.astype(w3_ref.dtype), w3_ref[...],
                preferred_element_type=jnp.float32)
    h = jnp.maximum(h + b3_ref[...], 0.0)
    # fc4 (no activation); output width is padded to a multiple of 128 lanes
    h = jnp.dot(h.astype(w4_ref.dtype), w4_ref[...],
                preferred_element_type=jnp.float32)
    h = h + b4_ref[...]
    o_ref[...] = h.astype(o_ref.dtype)


def simple_nn_forward(x, params, *, tb=128, compute_dtype=jnp.bfloat16):
    """x: (B, input_dim) float32. params: dict of w{i} (in,out), b{i} (1,out)."""
    B, input_dim = x.shape
    out_dim = params["w4"].shape[1]

    lane = 128
    out_pad = pl.cdiv(out_dim, lane) * lane       # lane-dense output slab
    b_pad = pl.cdiv(B, tb) * tb                   # batch padded to row tile

    # Pad batch rows with zeros, cast matmul operands to the MXU compute dtype.
    x_p = jnp.pad(x, ((0, b_pad - B), (0, 0))).astype(compute_dtype)

    w1 = params["w1"].astype(compute_dtype)
    w2 = params["w2"].astype(compute_dtype)
    w3 = params["w3"].astype(compute_dtype)
    w4 = jnp.pad(params["w4"],
                 ((0, 0), (0, out_pad - out_dim))).astype(compute_dtype)
    # Biases stay f32 (bias-add / ReLU run on the VPU in f32 on all gens).
    b1 = params["b1"].astype(jnp.float32)
    b2 = params["b2"].astype(jnp.float32)
    b3 = params["b3"].astype(jnp.float32)
    b4 = jnp.pad(params["b4"],
                 ((0, 0), (0, out_pad - out_dim))).astype(jnp.float32)

    d1, d2, d3 = w1.shape[1], w2.shape[1], w3.shape[1]
    grid = (b_pad // tb,)

    # Weights/biases: full-array blocks with a constant block index so Pallas
    # DMAs them once and keeps them VMEM-resident across grid steps.
    def resident(shape):
        return pl.BlockSpec(shape, lambda i: (0, 0))

    flops = 2 * b_pad * (input_dim * d1 + d1 * d2 + d2 * d3 + d3 * out_pad)
    bytes_accessed = (
        x_p.size * x_p.dtype.itemsize
        + sum(a.size * a.dtype.itemsize
              for a in (w1, w2, w3, w4, b1, b2, b3, b4))
        + b_pad * out_pad * 4)

    out = pl.pallas_call(
        mlp_kernel,
        out_shape=jax.ShapeDtypeStruct((b_pad, out_pad), jnp.float32),
        grid=grid,
        in_specs=[
            pl.BlockSpec((tb, input_dim), lambda i: (i, 0)),   # x row tile
            resident(w1.shape), resident(b1.shape),
            resident(w2.shape), resident(b2.shape),
            resident(w3.shape), resident(b3.shape),
            resident(w4.shape), resident(b4.shape),
        ],
        out_specs=pl.BlockSpec((tb, out_pad), lambda i: (i, 0)),
        compiler_params=pltpu.CompilerParams(
            dimension_semantics=("parallel",)),
        cost_estimate=pl.CostEstimate(
            flops=flops, transcendentals=0, bytes_accessed=bytes_accessed),
    )(x_p, w1, b1, w2, b2, w3, b3, w4, b4)

    # Drop batch padding and the dead output-lane padding outside the kernel.
    return out[:B, :out_dim]


def init_params(key, input_dim, output_dim):
    """Deterministic init matching nn.Linear shapes (stored transposed: (in, out))."""
    dims = [input_dim, 512, 256, 128, output_dim]
    params = {}
    for i in range(4):
        fan_in, fan_out = dims[i], dims[i + 1]
        key, kw, kb = jax.random.split(key, 3)
        bound = 1.0 / (fan_in ** 0.5)
        params[f"w{i+1}"] = jax.random.uniform(
            kw, (fan_in, fan_out), jnp.float32, -bound, bound)
        params[f"b{i+1}"] = jax.random.uniform(
            kb, (1, fan_out), jnp.float32, -bound, bound)
    return params


def reference_forward(x, params):
    h = x
    for i in range(1, 4):
        h = jnp.maximum(h @ params[f"w{i}"] + params[f"b{i}"], 0.0)
    return h @ params["w4"] + params["b4"]


if __name__ == "__main__":
    key = jax.random.PRNGKey(0)

    batch = 200        # rows after data.x.view(B, -1); padded to 256 in-kernel
    input_dim = 256    # flattened per-row feature size
    output_dim = 64

    key, kx, kp = jax.random.split(key, 3)
    x = jax.random.normal(kx, (batch, input_dim), dtype=jnp.float32)
    params = init_params(kp, input_dim, output_dim)

    ref = reference_forward(x, params)

    # f32-operand path: tight check of kernel structure / padding / grid.
    out_f32 = jax.block_until_ready(
        simple_nn_forward(x, params, compute_dtype=jnp.float32))
    assert out_f32.shape == (batch, output_dim)
    assert jnp.allclose(out_f32, ref, atol=1e-4, rtol=1e-4)

    # Default bf16-operand / f32-accumulation path (MXU-rate, half weight DMA).
    out_bf16 = jax.block_until_ready(simple_nn_forward(x, params))
    assert out_bf16.shape == (batch, output_dim)
    assert jnp.allclose(out_bf16, ref, atol=5e-2, rtol=5e-2)

    print("KERNEL_OK")
</pallas_src>

<mosaic_0001>
module attributes {stable_mosaic.version = 11 : i64} {
  func.func @mlp_kernel(%arg0: i32, %arg1: memref<128x256xf32, #tpu.memory_space<vmem>>, %arg2: memref<256x512xf32, #tpu.memory_space<vmem>>, %arg3: memref<1x512xf32, #tpu.memory_space<vmem>>, %arg4: memref<512x256xf32, #tpu.memory_space<vmem>>, %arg5: memref<1x256xf32, #tpu.memory_space<vmem>>, %arg6: memref<256x128xf32, #tpu.memory_space<vmem>>, %arg7: memref<1x128xf32, #tpu.memory_space<vmem>>, %arg8: memref<128x128xf32, #tpu.memory_space<vmem>>, %arg9: memref<1x128xf32, #tpu.memory_space<vmem>>, %arg10: memref<128x128xf32, #tpu.memory_space<vmem>>) attributes {dimension_semantics = [#tpu.dimension_semantics<parallel>], iteration_bounds = array<i64: 2>, scalar_prefetch = 0 : i64, scratch_operands = 0 : i64, tpu.core_type = #tpu.core_type<tc>, window_params = [{transform_indices = @transform_0, window_bounds = array<i64: 128, 256>}, {pipeline_mode = #tpu.pipeline_mode<synchronous>, transform_indices = @transform_1, window_bounds = array<i64: 256, 512>}, {pipeline_mode = #tpu.pipeline_mode<synchronous>, transform_indices = @transform_2, window_bounds = array<i64: 1, 512>}, {pipeline_mode = #tpu.pipeline_mode<synchronous>, transform_indices = @transform_3, window_bounds = array<i64: 512, 256>}, {pipeline_mode = #tpu.pipeline_mode<synchronous>, transform_indices = @transform_4, window_bounds = array<i64: 1, 256>}, {pipeline_mode = #tpu.pipeline_mode<synchronous>, transform_indices = @transform_5, window_bounds = array<i64: 256, 128>}, {pipeline_mode = #tpu.pipeline_mode<synchronous>, transform_indices = @transform_6, window_bounds = array<i64: 1, 128>}, {pipeline_mode = #tpu.pipeline_mode<synchronous>, transform_indices = @transform_7, window_bounds = array<i64: 128, 128>}, {pipeline_mode = #tpu.pipeline_mode<synchronous>, transform_indices = @transform_8, window_bounds = array<i64: 1, 128>}, {transform_indices = @transform_9, window_bounds = array<i64: 128, 128>}]} {
    %c0 = arith.constant 0 : index
    %c0_0 = arith.constant 0 : index
    %0 = vector.load %arg1[%c0, %c0_0] : memref<128x256xf32, #tpu.memory_space<vmem>>, vector<128x256xf32>
    %c0_1 = arith.constant 0 : index
    %c0_2 = arith.constant 0 : index
    %1 = vector.load %arg2[%c0_1, %c0_2] : memref<256x512xf32, #tpu.memory_space<vmem>>, vector<256x512xf32>
    %cst = arith.constant dense<0.000000e+00> : vector<128x512xf32>
    %2 = tpu.matmul %0, %1, %cst {dimension_numbers = #tpu.dot_dimension_numbers<[1], [0], [0], [1], [0, 0, 1, 1], [], []>} : vector<128x256xf32>, vector<256x512xf32>, vector<128x512xf32> -> vector<128x512xf32>
    %c0_3 = arith.constant 0 : index
    %c0_4 = arith.constant 0 : index
    %3 = vector.load %arg3[%c0_3, %c0_4] : memref<1x512xf32, #tpu.memory_space<vmem>>, vector<1x512xf32>
    %4 = vector.broadcast %3 : vector<1x512xf32> to vector<128x512xf32>
    %5 = arith.addf %2, %4 : vector<128x512xf32>
    %cst_5 = arith.constant 0.000000e+00 : f32
    %6 = vector.broadcast %cst_5 : f32 to vector<128x512xf32>
    %7 = arith.maximumf %5, %6 : vector<128x512xf32>
    %c0_6 = arith.constant 0 : index
    %c0_7 = arith.constant 0 : index
    %8 = vector.load %arg4[%c0_6, %c0_7] : memref<512x256xf32, #tpu.memory_space<vmem>>, vector<512x256xf32>
    %cst_8 = arith.constant dense<0.000000e+00> : vector<128x256xf32>
    %9 = tpu.matmul %7, %8, %cst_8 {dimension_numbers = #tpu.dot_dimension_numbers<[1], [0], [0], [1], [0, 0, 1, 1], [], []>} : vector<128x512xf32>, vector<512x256xf32>, vector<128x256xf32> -> vector<128x256xf32>
    %c0_9 = arith.constant 0 : index
    %c0_10 = arith.constant 0 : index
    %10 = vector.load %arg5[%c0_9, %c0_10] : memref<1x256xf32, #tpu.memory_space<vmem>>, vector<1x256xf32>
    %11 = vector.broadcast %10 : vector<1x256xf32> to vector<128x256xf32>
    %12 = arith.addf %9, %11 : vector<128x256xf32>
    %cst_11 = arith.constant 0.000000e+00 : f32
    %13 = vector.broadcast %cst_11 : f32 to vector<128x256xf32>
    %14 = arith.maximumf %12, %13 : vector<128x256xf32>
    %c0_12 = arith.constant 0 : index
    %c0_13 = arith.constant 0 : index
    %15 = vector.load %arg6[%c0_12, %c0_13] : memref<256x128xf32, #tpu.memory_space<vmem>>, vector<256x128xf32>
    %cst_14 = arith.constant dense<0.000000e+00> : vector<128x128xf32>
    %16 = tpu.matmul %14, %15, %cst_14 {dimension_numbers = #tpu.dot_dimension_numbers<[1], [0], [0], [1], [0, 0, 1, 1], [], []>} : vector<128x256xf32>, vector<256x128xf32>, vector<128x128xf32> -> vector<128x128xf32>
    %c0_15 = arith.constant 0 : index
    %c0_16 = arith.constant 0 : index
    %17 = vector.load %arg7[%c0_15, %c0_16] : memref<1x128xf32, #tpu.memory_space<vmem>>, vector<1x128xf32>
    %18 = vector.broadcast %17 : vector<1x128xf32> to vector<128x128xf32>
    %19 = arith.addf %16, %18 : vector<128x128xf32>
    %cst_17 = arith.constant 0.000000e+00 : f32
    %20 = vector.broadcast %cst_17 : f32 to vector<128x128xf32>
    %21 = arith.maximumf %19, %20 : vector<128x128xf32>
    %c0_18 = arith.constant 0 : index
    %c0_19 = arith.constant 0 : index
    %22 = vector.load %arg8[%c0_18, %c0_19] : memref<128x128xf32, #tpu.memory_space<vmem>>, vector<128x128xf32>
    %cst_20 = arith.constant dense<0.000000e+00> : vector<128x128xf32>
    %23 = tpu.matmul %21, %22, %cst_20 {dimension_numbers = #tpu.dot_dimension_numbers<[1], [0], [0], [1], [0, 0, 1, 1], [], []>} : vector<128x128xf32>, vector<128x128xf32>, vector<128x128xf32> -> vector<128x128xf32>
    %c0_21 = arith.constant 0 : index
    %c0_22 = arith.constant 0 : index
    %24 = vector.load %arg9[%c0_21, %c0_22] : memref<1x128xf32, #tpu.memory_space<vmem>>, vector<1x128xf32>
    %25 = vector.broadcast %24 : vector<1x128xf32> to vector<128x128xf32>
    %26 = arith.addf %23, %25 : vector<128x128xf32>
    %c0_23 = arith.constant 0 : index
    %c0_24 = arith.constant 0 : index
    %27 = vector.load %arg10[%c0_23, %c0_24] : memref<128x128xf32, #tpu.memory_space<vmem>>, vector<128x128xf32>
    tpu.vector_store %arg10[%c0_23, %c0_24], %26 {strides = array<i32>} : memref<128x128xf32, #tpu.memory_space<vmem>>, vector<128x128xf32>,
    return
  }
  func.func @transform_0(%arg0: i32) -> (i32, i32) {
    %c0_i32 = arith.constant 0 : i32
    %c0_i32_0 = arith.constant 0 : i32
    return %arg0, %c0_i32 : i32, i32
  }
  func.func @transform_1(%arg0: i32) -> (i32, i32) {
    %c0_i32 = arith.constant 0 : i32
    %c0_i32_0 = arith.constant 0 : i32
    %c0_i32_1 = arith.constant 0 : i32
    return %c0_i32, %c0_i32_0 : i32, i32
  }
  func.func @transform_2(%arg0: i32) -> (i32, i32) {
    %c0_i32 = arith.constant 0 : i32
    %c0_i32_0 = arith.constant 0 : i32
    %c0_i32_1 = arith.constant 0 : i32
    return %c0_i32, %c0_i32_0 : i32, i32
  }
  func.func @transform_3(%arg0: i32) -> (i32, i32) {
    %c0_i32 = arith.constant 0 : i32
    %c0_i32_0 = arith.constant 0 : i32
    %c0_i32_1 = arith.constant 0 : i32
    return %c0_i32, %c0_i32_0 : i32, i32
  }
  func.func @transform_4(%arg0: i32) -> (i32, i32) {
    %c0_i32 = arith.constant 0 : i32
    %c0_i32_0 = arith.constant 0 : i32
    %c0_i32_1 = arith.constant 0 : i32
    return %c0_i32, %c0_i32_0 : i32, i32
  }
  func.func @transform_5(%arg0: i32) -> (i32, i32) {
    %c0_i32 = arith.constant 0 : i32
    %c0_i32_0 = arith.constant 0 : i32
    %c0_i32_1 = arith.constant 0 : i32
    return %c0_i32, %c0_i32_0 : i32, i32
  }
  func.func @transform_6(%arg0: i32) -> (i32, i32) {
    %c0_i32 = arith.constant 0 : i32
    %c0_i32_0 = arith.constant 0 : i32
    %c0_i32_1 = arith.constant 0 : i32
    return %c0_i32, %c0_i32_0 : i32, i32
  }
  func.func @transform_7(%arg0: i32) -> (i32, i32) {
    %c0_i32 = arith.constant 0 : i32
    %c0_i32_0 = arith.constant 0 : i32
    %c0_i32_1 = arith.constant 0 : i32
    return %c0_i32, %c0_i32_0 : i32, i32
  }
  func.func @transform_8(%arg0: i32) -> (i32, i32) {
    %c0_i32 = arith.constant 0 : i32
    %c0_i32_0 = arith.constant 0 : i32
    %c0_i32_1 = arith.constant 0 : i32
    return %c0_i32, %c0_i32_0 : i32, i32
  }
  func.func @transform_9(%arg0: i32) -> (i32, i32) {
    %c0_i32 = arith.constant 0 : i32
    %c0_i32_0 = arith.constant 0 : i32
    return %arg0, %c0_i32 : i32, i32
  }
}

</mosaic_0001>

<llo_original>
// kernel: tpu_custom_call.1
$region0: #{tpu_custom_call.1}
  #allocation0 [shape = 'u32[]', space=smem, size = 0x4, offset = 0x4, fixed_abs, tag = 'smem constant byte address 0x4 - core index']
  #allocation1 [shape = 'u32[144,128]{1,0:T(1,128)}', space=vmem, size = 0x12000, scoped, tag = 'internal scratch']
  %s0 = inlined_call_operand.hbm [shape: f32[256,256], index: 0, kind: input, shape index: {}]
  %s1 = inlined_call_operand.hbm [shape: f32[256,512], index: 1, kind: input, shape index: {}]
  %s2 = inlined_call_operand.hbm [shape: f32[1,512], index: 2, kind: input, shape index: {}]
  %s3 = inlined_call_operand.hbm [shape: f32[512,256], index: 3, kind: input, shape index: {}]
  %s4 = inlined_call_operand.vmem [shape: f32[1,256], index: 4, kind: input, shape index: {}]
  %s5 = inlined_call_operand.hbm [shape: f32[256,128], index: 5, kind: input, shape index: {}]
  %s6 = inlined_call_operand.vmem [shape: f32[1,128], index: 6, kind: input, shape index: {}]
  %s7 = inlined_call_operand.hbm [shape: f32[128,128], index: 7, kind: input, shape index: {}]
  %s8 = inlined_call_operand.vmem [shape: f32[1,128], index: 8, kind: input, shape index: {}]
  %s9 = inlined_call_operand.hbm [shape: f32[256,128], index: 9, kind: output, shape index: {}]
  %s10 = sld [smem:[#allocation0]]
  $region93: #{tpu_custom_call.1} parent=0
    _
  %s12 = ssub.s32 1, %s10
  %s13 = scalar_select 0, %s12, %s10
  $region1: #{tpu_custom_call.1} parent=0
    #allocation2 [shape = 'u8[262144]{0}', space=vmem, size = 0x40000, scoped, tag = 'input window, operand 0']
    #allocation3 [shape = 's32[2]{0}', space=sflag, size = 0x8, scoped, tag = 'scoped memory for tpu_custom_call.1']
    #allocation4 [shape = 's32[2]{0}', space=sflag, size = 0x8, scoped, tag = 'scoped memory for tpu_custom_call.1']
    #allocation5 [shape = 'u8[524288]{0}', space=vmem, size = 0x80000, scoped, tag = 'input window, operand 1, single buffered']
    #allocation6 [shape = 's32[1]{0}', space=sflag, size = 0x4, scoped, tag = 'scoped memory for tpu_custom_call.1']
    #allocation7 [shape = 'u8[2048]{0}', space=vmem, size = 0x800, scoped, tag = 'input window, operand 2, single buffered']
    #allocation8 [shape = 'u8[524288]{0}', space=vmem, size = 0x80000, scoped, tag = 'input window, operand 3, single buffered']
    #allocation9 [shape = 's32[1]{0}', space=sflag, size = 0x4, scoped, tag = 'scoped memory for tpu_custom_call.1']
    #allocation10 [shape = 'u8[131072]{0}', space=vmem, size = 0x20000, scoped, tag = 'input window, operand 5, single buffered']
    #allocation11 [shape = 'u8[65536]{0}', space=vmem, size = 0x10000, scoped, tag = 'input window, operand 7, single buffered']
    #allocation12 [shape = 's32[1]{0}', space=sflag, size = 0x4, scoped, tag = 'scoped memory for tpu_custom_call.1']
    #allocation13 [shape = 'u8[131072]{0}', space=vmem, size = 0x20000, scoped, tag = 'output window, operand 0']
    %14 = vsyncpa [#allocation3], 0
    %s15 = scalar_lea.sflag [#allocation3], 1
    %16 = vsyncpa %s15, 0
    %17 = vsyncpa [#allocation6], 0
    %18 = vsyncpa [#allocation9], 0
    %19 = vsyncpa [#allocation12], 0
    %20 = vsyncpa [#allocation4], 0
    %s21 = scalar_lea.sflag [#allocation4], 1
    %22 = vsyncpa %s21, 0
    loop: start=0, step=1, limit=4
    $region2: #{tpu_custom_call.1} parent=1 // loop_pre_header
      _
    $region3: #{tpu_custom_call.1} parent=1 // loop_header
      %s24 = sphi 0, %s28
      %p25 = scmp.ge.s32.totalorder %s24, 4
      %s34 = sphi 0, %s36
      %s37 = sphi 0, %s34
      %s38 = sphi 0, %s37
      %s54 = sphi 0, %s38
      %s58 = sphi 0, %s58
      %s60 = sphi 0, %s58
      %s61 = sphi 0, %s60
      %s75 = sphi 0, %s61
      %s79 = sphi 0, %s79
      %s81 = sphi 0, %s79
      %s82 = sphi 0, %s81
      %s96 = sphi 0, %s82
      %s100 = sphi 0, %s100
      %s102 = sphi 0, %s100
      %s103 = sphi 0, %s102
      %s117 = sphi 0, %s103
      %s121 = sphi 0, %s121
      %s123 = sphi 0, %s121
      %s124 = sphi 0, %s123
      %s138 = sphi 0, %s124
      %s142 = sphi 0, %s142
      %s144 = sphi 0, %s142
      %s145 = sphi 0, %s144
      %s159 = sphi 0, %s145
      %s163 = sphi 0, %s163
      %s165 = sphi 0, %s163
      %s166 = sphi 0, %s165
      %s180 = sphi 0, %s166
      %s184 = sphi 0, %s184
      %s186 = sphi 0, %s184
      %s187 = sphi 0, %s186
      %s201 = sphi 0, %s187
      %s205 = sphi 0, %s205
      %s207 = sphi 0, %s205
      %s208 = sphi 0, %s207
      %s222 = sphi 0, %s208
      %s228 = sphi 0, %s230
      %s231 = sphi 0, %s228
      %s232 = sphi 0, %s231
      %s248 = sphi 0, %s232
    $region4: #{tpu_custom_call.1} parent=1 // loop_header_branch
      %27 = sbr.rel (%p25) target = $region8
    $region5: #{tpu_custom_call.1} parent=1 // loop_body
      %s29 = ssub.s32 %s24, 1
      %s30 = ssub.s32 %s24, 2
      %s31 = sadd.s32 %s24, 1
      %s32 = ssub.s32 %s24, %s31
      %p33 = scmp.eq.s32.totalorder %s32, 0
      %s35 = sadd.s32 %s34, 1
      %s36 = scalar_select %p33, %s34, %s35
      %p39 = pneg %p33
      %p40 = scmp.eq.s32.totalorder %s24, 1
      %p41 = por %p39, %p40
      %p42 = scmp.ne.s32.totalorder %s34, %s37
      %p43 = scmp.eq.s32.totalorder %s24, 0
      %p44 = por %p42, %p43
      %p45 = scmp.ne.s32.totalorder %s34, %s37
      %p46 = scmp.eq.s32.totalorder %s29, 1
      %p47 = por %p45, %p46
      %p48 = scmp.ne.s32.totalorder %s37, %s38
      %p49 = scmp.eq.s32.totalorder %s29, 0
      %p50 = por %p48, %p49
      %p51 = scmp.ne.s32.totalorder %s37, %s38
      %p52 = scmp.eq.s32.totalorder %s30, 1
      %p53 = por %p51, %p52
      %p55 = scmp.ne.s32.totalorder %s38, %s54
      %p56 = scmp.eq.s32.totalorder %s30, 0
      %p57 = por %p55, %p56
      %s59 = sadd.s32 %s58, 1
      %p62 = scmp.eq.s32.totalorder %s24, 1
      %p63 = scmp.ne.s32.totalorder %s58, %s60
      %p64 = scmp.eq.s32.totalorder %s24, 0
      %p65 = por %p63, %p64
      %p66 = scmp.ne.s32.totalorder %s58, %s60
      %p67 = scmp.eq.s32.totalorder %s29, 1
      %p68 = por %p66, %p67
      %p69 = scmp.ne.s32.totalorder %s60, %s61
      %p70 = scmp.eq.s32.totalorder %s29, 0
      %p71 = por %p69, %p70
      %p72 = scmp.ne.s32.totalorder %s60, %s61
      %p73 = scmp.eq.s32.totalorder %s30, 1
      %p74 = por %p72, %p73
      %p76 = scmp.ne.s32.totalorder %s61, %s75
      %p77 = scmp.eq.s32.totalorder %s30, 0
      %p78 = por %p76, %p77
      %s80 = sadd.s32 %s79, 1
      %p83 = scmp.eq.s32.totalorder %s24, 1
      %p84 = scmp.ne.s32.totalorder %s79, %s81
      %p85 = scmp.eq.s32.totalorder %s24, 0
      %p86 = por %p84, %p85
      %p87 = scmp.ne.s32.totalorder %s79, %s81
      %p88 = scmp.eq.s32.totalorder %s29, 1
      %p89 = por %p87, %p88
      %p90 = scmp.ne.s32.totalorder %s81, %s82
      %p91 = scmp.eq.s32.totalorder %s29, 0
      %p92 = por %p90, %p91
      %p93 = scmp.ne.s32.totalorder %s81, %s82
      %p94 = scmp.eq.s32.totalorder %s30, 1
      %p95 = por %p93, %p94
      %p97 = scmp.ne.s32.totalorder %s82, %s96
      %p98 = scmp.eq.s32.totalorder %s30, 0
      %p99 = por %p97, %p98
      %s101 = sadd.s32 %s100, 1
      %p104 = scmp.eq.s32.totalorder %s24, 1
      %p105 = scmp.ne.s32.totalorder %s100, %s102
      %p106 = scmp.eq.s32.totalorder %s24, 0
      %p107 = por %p105, %p106
      %p108 = scmp.ne.s32.totalorder %s100, %s102
      %p109 = scmp.eq.s32.totalorder %s29, 1
      %p110 = por %p108, %p109
      %p111 = scmp.ne.s32.totalorder %s102, %s103
      %p112 = scmp.eq.s32.totalorder %s29, 0
      %p113 = por %p111, %p112
      %p114 = scmp.ne.s32.totalorder %s102, %s103
      %p115 = scmp.eq.s32.totalorder %s30, 1
      %p116 = por %p114, %p115
      %p118 = scmp.ne.s32.totalorder %s103, %s117
      %p119 = scmp.eq.s32.totalorder %s30, 0
      %p120 = por %p118, %p119
      %s122 = sadd.s32 %s121, 1
      %p125 = scmp.eq.s32.totalorder %s24, 1
      %p126 = scmp.ne.s32.totalorder %s121, %s123
      %p127 = scmp.eq.s32.totalorder %s24, 0
      %p128 = por %p126, %p127
      %p129 = scmp.ne.s32.totalorder %s121, %s123
      %p130 = scmp.eq.s32.totalorder %s29, 1
      %p131 = por %p129, %p130
      %p132 = scmp.ne.s32.totalorder %s123, %s124
      %p133 = scmp.eq.s32.totalorder %s29, 0
      %p134 = por %p132, %p133
      %p135 = scmp.ne.s32.totalorder %s123, %s124
      %p136 = scmp.eq.s32.totalorder %s30, 1
      %p137 = por %p135, %p136
      %p139 = scmp.ne.s32.totalorder %s124, %s138
      %p140 = scmp.eq.s32.totalorder %s30, 0
      %p141 = por %p139, %p140
      %s143 = sadd.s32 %s142, 1
      %p146 = scmp.eq.s32.totalorder %s24, 1
      %p147 = scmp.ne.s32.totalorder %s142, %s144
      %p148 = scmp.eq.s32.totalorder %s24, 0
      %p149 = por %p147, %p148
      %p150 = scmp.ne.s32.totalorder %s142, %s144
      %p151 = scmp.eq.s32.totalorder %s29, 1
      %p152 = por %p150, %p151
      %p153 = scmp.ne.s32.totalorder %s144, %s145
      %p154 = scmp.eq.s32.totalorder %s29, 0
      %p155 = por %p153, %p154
      %p156 = scmp.ne.s32.totalorder %s144, %s145
      %p157 = scmp.eq.s32.totalorder %s30, 1
      %p158 = por %p156, %p157
      %p160 = scmp.ne.s32.totalorder %s145, %s159
      %p161 = scmp.eq.s32.totalorder %s30, 0
      %p162 = por %p160, %p161
      %s164 = sadd.s32 %s163, 1
      %p167 = scmp.eq.s32.totalorder %s24, 1
      %p168 = scmp.ne.s32.totalorder %s163, %s165
      %p169 = scmp.eq.s32.totalorder %s24, 0
      %p170 = por %p168, %p169
      %p171 = scmp.ne.s32.totalorder %s163, %s165
      %p172 = scmp.eq.s32.totalorder %s29, 1
      %p173 = por %p171, %p172
      %p174 = scmp.ne.s32.totalorder %s165, %s166
      %p175 = scmp.eq.s32.totalorder %s29, 0
      %p176 = por %p174, %p175
      %p177 = scmp.ne.s32.totalorder %s165, %s166
      %p178 = scmp.eq.s32.totalorder %s30, 1
      %p179 = por %p177, %p178
      %p181 = scmp.ne.s32.totalorder %s166, %s180
      %p182 = scmp.eq.s32.totalorder %s30, 0
      %p183 = por %p181, %p182
      %s185 = sadd.s32 %s184, 1
      %p188 = scmp.eq.s32.totalorder %s24, 1
      %p189 = scmp.ne.s32.totalorder %s184, %s186
      %p190 = scmp.eq.s32.totalorder %s24, 0
      %p191 = por %p189, %p190
      %p192 = scmp.ne.s32.totalorder %s184, %s186
      %p193 = scmp.eq.s32.totalorder %s29, 1
      %p194 = por %p192, %p193
      %p195 = scmp.ne.s32.totalorder %s186, %s187
      %p196 = scmp.eq.s32.totalorder %s29, 0
      %p197 = por %p195, %p196
      %p198 = scmp.ne.s32.totalorder %s186, %s187
      %p199 = scmp.eq.s32.totalorder %s30, 1
      %p200 = por %p198, %p199
      %p202 = scmp.ne.s32.totalorder %s187, %s201
      %p203 = scmp.eq.s32.totalorder %s30, 0
      %p204 = por %p202, %p203
      %s206 = sadd.s32 %s205, 1
      %p209 = scmp.eq.s32.totalorder %s24, 1
      %p210 = scmp.ne.s32.totalorder %s205, %s207
      %p211 = scmp.eq.s32.totalorder %s24, 0
      %p212 = por %p210, %p211
      %p213 = scmp.ne.s32.totalorder %s205, %s207
      %p214 = scmp.eq.s32.totalorder %s29, 1
      %p215 = por %p213, %p214
      %p216 = scmp.ne.s32.totalorder %s207, %s208
      %p217 = scmp.eq.s32.totalorder %s29, 0
      %p218 = por %p216, %p217
      %p219 = scmp.ne.s32.totalorder %s207, %s208
      %p220 = scmp.eq.s32.totalorder %s30, 1
      %p221 = por %p219, %p220
      %p223 = scmp.ne.s32.totalorder %s208, %s222
      %p224 = scmp.eq.s32.totalorder %s30, 0
      %p225 = por %p223, %p224
      %s226 = ssub.s32 %s24, %s31
      %p227 = scmp.eq.s32.totalorder %s226, 0
      %s229 = sadd.s32 %s228, 1
      %s230 = scalar_select %p227, %s228, %s229
      %p233 = pneg %p227
      %p234 = scmp.eq.s32.totalorder %s24, 1
      %p235 = por %p233, %p234
      %p236 = scmp.ne.s32.totalorder %s228, %s231
      %p237 = scmp.eq.s32.totalorder %s24, 0
      %p238 = por %p236, %p237
      %p239 = scmp.ne.s32.totalorder %s228, %s231
      %p240 = scmp.eq.s32.totalorder %s29, 1
      %p241 = por %p239, %p240
      %p242 = scmp.ne.s32.totalorder %s231, %s232
      %p243 = scmp.eq.s32.totalorder %s29, 0
      %p244 = por %p242, %p243
      %p245 = scmp.ne.s32.totalorder %s231, %s232
      %p246 = scmp.eq.s32.totalorder %s30, 1
      %p247 = por %p245, %p246
      %p249 = scmp.ne.s32.totalorder %s232, %s248
      %p250 = scmp.eq.s32.totalorder %s30, 0
      %p251 = por %p249, %p250
      %p252 = scmp.le.s32.totalorder 1, %s24
      %p253 = scmp.lt.s32.totalorder %s24, 3
      %p254 = pnand %p252, %p253
      %p255 = pneg %p254
      // Predicated region
      $region9: #{tpu_custom_call.1} parent=5 // pred_check
        _
      $region10: #{tpu_custom_call.1} parent=5 // pred_check_branch
        %257 = sbr.rel (%p254) target = $region12
      $region11: #{tpu_custom_call.1} parent=5 // pred_region
        %s258 = ssub.s32 %s24, 1
        // Predicated region
        $region13: #{tpu_custom_call.1} parent=11 // pred_check
          %p259 = pneg %p71
        $region14: #{tpu_custom_call.1} parent=11 // pred_check_branch
          %261 = sbr.rel (%p259) target = $region16
        $region15: #{tpu_custom_call.1} parent=11 // pred_region
          %s263 = ssub.s32 16384, 16384
          %264 = vsyncadd [#allocation6], %s263
          %s265 = sshll.u32 [#allocation5], 4
          %s266 = int_to_ptr.vmem [resolvable:$true] %s265
          %271 = dma.hbm_to_vmem [thread:$0]  %s1, 16384, %s266, [#allocation6], 512, 512, 32
        $region16: #{tpu_custom_call.1} parent=11 // pred_fallthru
          _
        // Predicated region
        $region17: #{tpu_custom_call.1} parent=11 // pred_check
          %p272 = pneg %p92
        $region18: #{tpu_custom_call.1} parent=11 // pred_check_branch
          %274 = sbr.rel (%p272) target = $region20
        $region19: #{tpu_custom_call.1} parent=11 // pred_region
          %s276 = ssub.s32 64, 64
          %277 = vsyncadd [#allocation6], %s276
          %s279 = sshll.u32 [#allocation7], 4
          %s280 = int_to_ptr.vmem [resolvable:$true] %s279
          %282 = dma.hbm_to_vmem [thread:$0]  %s2, 64, %s280, [#allocation6]
        $region20: #{tpu_custom_call.1} parent=11 // pred_fallthru
          _
        // Predicated region
        $region21: #{tpu_custom_call.1} parent=11 // pred_check
          %p283 = pneg %p113
        $region22: #{tpu_custom_call.1} parent=11 // pred_check_branch
          %285 = sbr.rel (%p283) target = $region24
        $region23: #{tpu_custom_call.1} parent=11 // pred_region
          %s287 = ssub.s32 16384, 16384
          %288 = vsyncadd [#allocation9], %s287
          %s289 = sshll.u32 [#allocation8], 4
          %s290 = int_to_ptr.vmem [resolvable:$true] %s289
          %295 = dma.hbm_to_vmem [thread:$0]  %s3, 16384, %s290, [#allocation9], 256, 256, 16
        $region24: #{tpu_custom_call.1} parent=11 // pred_fallthru
          _
        // Predicated region
        $region25: #{tpu_custom_call.1} parent=11 // pred_check
          %p296 = pneg %p134
        $region26: #{tpu_custom_call.1} parent=11 // pred_check_branch
          %298 = sbr.rel (%p296) target = $region28
        $region27: #{tpu_custom_call.1} parent=11 // pred_region
          _
        $region28: #{tpu_custom_call.1} parent=11 // pred_fallthru
          _
        // Predicated region
        $region29: #{tpu_custom_call.1} parent=11 // pred_check
          %p299 = pneg %p155
        $region30: #{tpu_custom_call.1} parent=11 // pred_check_branch
          %301 = sbr.rel (%p299) target = $region32
        $region31: #{tpu_custom_call.1} parent=11 // pred_region
          %s303 = ssub.s32 4096, 4096
          %304 = vsyncadd [#allocation9], %s303
          %s305 = sshll.u32 [#allocation10], 4
          %s306 = int_to_ptr.vmem [resolvable:$true] %s305
          %311 = dma.hbm_to_vmem [thread:$0]  %s5, 4096, %s306, [#allocation9], 128, 128, 8
        $region32: #{tpu_custom_call.1} parent=11 // pred_fallthru
          _
        // Predicated region
        $region33: #{tpu_custom_call.1} parent=11 // pred_check
          %p312 = pneg %p176
        $region34: #{tpu_custom_call.1} parent=11 // pred_check_branch
          %314 = sbr.rel (%p312) target = $region36
        $region35: #{tpu_custom_call.1} parent=11 // pred_region
          _
        $region36: #{tpu_custom_call.1} parent=11 // pred_fallthru
          _
        // Predicated region
        $region37: #{tpu_custom_call.1} parent=11 // pred_check
          %p315 = pneg %p197
        $region38: #{tpu_custom_call.1} parent=11 // pred_check_branch
          %317 = sbr.rel (%p315) target = $region40
        $region39: #{tpu_custom_call.1} parent=11 // pred_region
          %s319 = ssub.s32 2048, 2048
          %320 = vsyncadd [#allocation12], %s319
          %s321 = sshll.u32 [#allocation11], 4
          %s322 = int_to_ptr.vmem [resolvable:$true] %s321
          %327 = dma.hbm_to_vmem [thread:$0]  %s7, 2048, %s322, [#allocation12], 128, 128, 8
        $region40: #{tpu_custom_call.1} parent=11 // pred_fallthru
          _
        // Predicated region
        $region41: #{tpu_custom_call.1} parent=11 // pred_check
          %p328 = pneg %p218
        $region42: #{tpu_custom_call.1} parent=11 // pred_check_branch
          %330 = sbr.rel (%p328) target = $region44
        $region43: #{tpu_custom_call.1} parent=11 // pred_region
          _
        $region44: #{tpu_custom_call.1} parent=11 // pred_fallthru
          _
      $region12: #{tpu_custom_call.1} parent=5 // pred_fallthru
        _
      %p331 = scmp.lt.s32.totalorder %s24, 2
      // Predicated region
      $region45: #{tpu_custom_call.1} parent=5 // pred_check
        %p332 = pneg %p331
      $region46: #{tpu_custom_call.1} parent=5 // pred_check_branch
        %334 = sbr.rel (%p332) target = $region48
      $region47: #{tpu_custom_call.1} parent=5 // pred_region
        // Predicated region
        $region49: #{tpu_custom_call.1} parent=47 // pred_check
          %p335 = pneg %p44
        $region50: #{tpu_custom_call.1} parent=47 // pred_check_branch
          %337 = sbr.rel (%p335) target = $region52
        $region51: #{tpu_custom_call.1} parent=47 // pred_region
          %s338 = sand.u32 %s34, 1
          %s339 = scalar_lea.sflag [#allocation3], %s338
          %s340 = sand.u32 %s34, 1
          %s341 = smul.addr %s340, 256
          %s342 = scalar_lea.vmem [#allocation2], %s341
          %s343 = smul.u32 16, %s24
          %s345 = ssub.s32 4096, 4096
          %346 = vsyncadd %s339, %s345
          %s347 = smul.addr %s343, 2
          %s348 = smul.addr %s347, 128
          %s349 = scalar_lea.hbm %s0, %s348
          %s350 = sshll.u32 %s342, 4
          %s351 = int_to_ptr.vmem [resolvable:$true] %s350
          %356 = dma.hbm_to_vmem [thread:$0]  %s349, 4096, %s351, %s339, 256, 256, 16
        $region52: #{tpu_custom_call.1} parent=47 // pred_fallthru
          _
      $region48: #{tpu_custom_call.1} parent=5 // pred_fallthru
        _
      %p357 = scmp.le.s32.totalorder 1, %s24
      %p358 = scmp.lt.s32.totalorder %s24, 3
      %p359 = pnand %p357, %p358
      %p360 = pneg %p359
      // Predicated region
      $region53: #{tpu_custom_call.1} parent=5 // pred_check
        _
      $region54: #{tpu_custom_call.1} parent=5 // pred_check_branch
        %362 = sbr.rel (%p359) target = $region56
      $region55: #{tpu_custom_call.1} parent=5 // pred_region
        %s363 = ssub.s32 %s24, 1
        %s364 = sand.u32 %s37, 1
        %s365 = scalar_lea.sflag [#allocation3], %s364
        %s366 = sand.u32 %s37, 1
        %s367 = smul.addr %s366, 256
        %s368 = scalar_lea.vmem [#allocation2], %s367
        // Predicated region
        $region57: #{tpu_custom_call.1} parent=55 // pred_check
          %p369 = pneg %p50
        $region58: #{tpu_custom_call.1} parent=55 // pred_check_branch
          %371 = sbr.rel (%p369) target = $region60
        $region59: #{tpu_custom_call.1} parent=55 // pred_region
          %372 = dma.done %s365, 4096
        $region60: #{tpu_custom_call.1} parent=55 // pred_fallthru
          _
        // Predicated region
        $region61: #{tpu_custom_call.1} parent=55 // pred_check
          %p373 = pneg %p71
        $region62: #{tpu_custom_call.1} parent=55 // pred_check_branch
          %375 = sbr.rel (%p373) target = $region64
        $region63: #{tpu_custom_call.1} parent=55 // pred_region
          %376 = dma.done [#allocation6], 16384
        $region64: #{tpu_custom_call.1} parent=55 // pred_fallthru
          _
        // Predicated region
        $region65: #{tpu_custom_call.1} parent=55 // pred_check
          %p377 = pneg %p92
        $region66: #{tpu_custom_call.1} parent=55 // pred_check_branch
          %379 = sbr.rel (%p377) target = $region68
        $region67: #{tpu_custom_call.1} parent=55 // pred_region
          %380 = dma.done [#allocation6], 64
        $region68: #{tpu_custom_call.1} parent=55 // pred_fallthru
          _
        // Predicated region
        $region69: #{tpu_custom_call.1} parent=55 // pred_check
          %p381 = pneg %p113
        $region70: #{tpu_custom_call.1} parent=55 // pred_check_branch
          %383 = sbr.rel (%p381) target = $region72
        $region71: #{tpu_custom_call.1} parent=55 // pred_region
          %384 = dma.done [#allocation9], 16384
        $region72: #{tpu_custom_call.1} parent=55 // pred_fallthru
          _
        // Predicated region
        $region73: #{tpu_custom_call.1} parent=55 // pred_check
          %p385 = pneg %p155
        $region74: #{tpu_custom_call.1} parent=55 // pred_check_branch
          %387 = sbr.rel (%p385) target = $region76
        $region75: #{tpu_custom_call.1} parent=55 // pred_region
          %388 = dma.done [#allocation9], 4096
        $region76: #{tpu_custom_call.1} parent=55 // pred_fallthru
          _
        // Predicated region
        $region77: #{tpu_custom_call.1} parent=55 // pred_check
          %p389 = pneg %p197
        $region78: #{tpu_custom_call.1} parent=55 // pred_check_branch
          %391 = sbr.rel (%p389) target = $region80
        $region79: #{tpu_custom_call.1} parent=55 // pred_region
          %392 = dma.done [#allocation12], 2048
        $region80: #{tpu_custom_call.1} parent=55 // pred_fallthru
          _
        %s393 = sand.u32 %s37, 1
        %s394 = scalar_lea.sflag [#allocation3], %s393
        %s395 = sand.u32 %s37, 1
        %s396 = smul.addr %s395, 256
        %s397 = scalar_lea.vmem [#allocation2], %s396
        %p398 = pneg %p50
        %p399 = pneg %p47
        %p400 = pneg %p71
        %p401 = pneg %p68
        %p402 = pneg %p92
        %p403 = pneg %p89
        %p404 = pneg %p113
        %p405 = pneg %p110
        %p406 = pneg %p134
        %p407 = pneg %p131
        %p408 = pneg %p155
        %p409 = pneg %p152
        %p410 = pneg %p176
        %p411 = pneg %p173
        %p412 = pneg %p197
        %p413 = pneg %p194
        %p414 = pneg %p218
        %p415 = pneg %p215
        %p416 = pneg %p244
        %p417 = pneg %p241
        %s418 = sand.u32 %s231, 1
        %s419 = scalar_lea.sflag [#allocation4], %s418
        %s420 = sand.u32 %s231, 1
        %s421 = smul.addr %s420, 128
        %s422 = scalar_lea.vmem [#allocation13], %s421
        %s423 = smul.u32 16, %s29
        %s424 = smul.u32 16, %s29
        %v425 = vld [vmem:[%s368] sm:$0xff]
        %v426 = vld [vmem:[%s368 + $0x8] sm:$0xff]
        %v427 = vld [vmem:[%s368 + $0x10] sm:$0xff]
        %v428 = vld [vmem:[%s368 + $0x18] sm:$0xff]
        %v429 = vld [vmem:[%s368 + $0x20] sm:$0xff]
        %v430 = vld [vmem:[%s368 + $0x28] sm:$0xff]
        %v431 = vld [vmem:[%s368 + $0x30] sm:$0xff]
        %v432 = vld [vmem:[%s368 + $0x38] sm:$0xff]
        %v433 = vld [vmem:[%s368 + $0x40] sm:$0xff]
        %v434 = vld [vmem:[%s368 + $0x48] sm:$0xff]
        %v435 = vld [vmem:[%s368 + $0x50] sm:$0xff]
        %v436 = vld [vmem:[%s368 + $0x58] sm:$0xff]
        %v437 = vld [vmem:[%s368 + $0x60] sm:$0xff]
        %v438 = vld [vmem:[%s368 + $0x68] sm:$0xff]
        %v439 = vld [vmem:[%s368 + $0x70] sm:$0xff]
        %v440 = vld [vmem:[%s368 + $0x78] sm:$0xff]
        %v441 = vld [vmem:[%s368 + $0x80] sm:$0xff]
        %v442 = vld [vmem:[%s368 + $0x88] sm:$0xff]
        %v443 = vld [vmem:[%s368 + $0x90] sm:$0xff]
        %v444 = vld [vmem:[%s368 + $0x98] sm:$0xff]
        %v445 = vld [vmem:[%s368 + $0xa0] sm:$0xff]
        %v446 = vld [vmem:[%s368 + $0xa8] sm:$0xff]
        %v447 = vld [vmem:[%s368 + $0xb0] sm:$0xff]
        %v448 = vld [vmem:[%s368 + $0xb8] sm:$0xff]
        %v449 = vld [vmem:[%s368 + $0xc0] sm:$0xff]
        %v450 = vld [vmem:[%s368 + $0xc8] sm:$0xff]
        %v451 = vld [vmem:[%s368 + $0xd0] sm:$0xff]
        %v452 = vld [vmem:[%s368 + $0xd8] sm:$0xff]
        %v453 = vld [vmem:[%s368 + $0xe0] sm:$0xff]
        %v454 = vld [vmem:[%s368 + $0xe8] sm:$0xff]
        %v455 = vld [vmem:[%s368 + $0xf0] sm:$0xff]
        %v456 = vld [vmem:[%s368 + $0xf8] sm:$0xff]
        %v457 = vld [vmem:[#allocation5] sm:$0xff]
        %v458 = vld [vmem:[#allocation5 + $0x8] sm:$0xff]
        %v459 = vld [vmem:[#allocation5 + $0x10] sm:$0xff]
        %v460 = vld [vmem:[#allocation5 + $0x18] sm:$0xff]
        %v461 = vld [vmem:[#allocation5 + $0x20] sm:$0xff]
        %v462 = vld [vmem:[#allocation5 + $0x28] sm:$0xff]
        %v463 = vld [vmem:[#allocation5 + $0x30] sm:$0xff]
        %v464 = vld [vmem:[#allocation5 + $0x38] sm:$0xff]
        %v465 = vld [vmem:[#allocation5 + $0x40] sm:$0xff]
        %v466 = vld [vmem:[#allocation5 + $0x48] sm:$0xff]
        %v467 = vld [vmem:[#allocation5 + $0x50] sm:$0xff]
        %v468 = vld [vmem:[#allocation5 + $0x58] sm:$0xff]
        %v469 = vld [vmem:[#allocation5 + $0x60] sm:$0xff]
        %v470 = vld [vmem:[#allocation5 + $0x68] sm:$0xff]
        %v471 = vld [vmem:[#allocation5 + $0x70] sm:$0xff]
        %v472 = vld [vmem:[#allocation5 + $0x78] sm:$0xff]
        %v473 = vld [vmem:[#allocation5 + $0x80] sm:$0xff]
        %v474 = vld [vmem:[#allocation5 + $0x88] sm:$0xff]
        %v475 = vld [vmem:[#allocation5 + $0x90] sm:$0xff]
        %v476 = vld [vmem:[#allocation5 + $0x98] sm:$0xff]
        %v477 = vld [vmem:[#allocation5 + $0xa0] sm:$0xff]
        %v478 = vld [vmem:[#allocation5 + $0xa8] sm:$0xff]
        %v479 = vld [vmem:[#allocation5 + $0xb0] sm:$0xff]
        %v480 = vld [vmem:[#allocation5 + $0xb8] sm:$0xff]
        %v481 = vld [vmem:[#allocation5 + $0xc0] sm:$0xff]
        %v482 = vld [vmem:[#allocation5 + $0xc8] sm:$0xff]
        %v483 = vld [vmem:[#allocation5 + $0xd0] sm:$0xff]
        %v484 = vld [vmem:[#allocation5 + $0xd8] sm:$0xff]
        %v485 = vld [vmem:[#allocation5 + $0xe0] sm:$0xff]
        %v486 = vld [vmem:[#allocation5 + $0xe8] sm:$0xff]
        %v487 = vld [vmem:[#allocation5 + $0xf0] sm:$0xff]
        %v488 = vld [vmem:[#allocation5 + $0xf8] sm:$0xff]
        %v489 = vld [vmem:[#allocation5 + $0x100] sm:$0xff]
        %v490 = vld [vmem:[#allocation5 + $0x108] sm:$0xff]
        %v491 = vld [vmem:[#allocation5 + $0x110] sm:$0xff]
        %v492 = vld [vmem:[#allocation5 + $0x118] sm:$0xff]
        %v493 = vld [vmem:[#allocation5 + $0x120] sm:$0xff]
        %v494 = vld [vmem:[#allocation5 + $0x128] sm:$0xff]
        %v495 = vld [vmem:[#allocation5 + $0x130] sm:$0xff]
        %v496 = vld [vmem:[#allocation5 + $0x138] sm:$0xff]
        %v497 = vld [vmem:[#allocation5 + $0x140] sm:$0xff]
        %v498 = vld [vmem:[#allocation5 + $0x148] sm:$0xff]
        %v499 = vld [vmem:[#allocation5 + $0x150] sm:$0xff]
        %v500 = vld [vmem:[#allocation5 + $0x158] sm:$0xff]
        %v501 = vld [vmem:[#allocation5 + $0x160] sm:$0xff]
        %v502 = vld [vmem:[#allocation5 + $0x168] sm:$0xff]
        %v503 = vld [vmem:[#allocation5 + $0x170] sm:$0xff]
        %v504 = vld [vmem:[#allocation5 + $0x178] sm:$0xff]
        %v505 = vld [vmem:[#allocation5 + $0x180] sm:$0xff]
        %v506 = vld [vmem:[#allocation5 + $0x188] sm:$0xff]
        %v507 = vld [vmem:[#allocation5 + $0x190] sm:$0xff]
        %v508 = vld [vmem:[#allocation5 + $0x198] sm:$0xff]
        %v509 = vld [vmem:[#allocation5 + $0x1a0] sm:$0xff]
        %v510 = vld [vmem:[#allocation5 + $0x1a8] sm:$0xff]
        %v511 = vld [vmem:[#allocation5 + $0x1b0] sm:$0xff]
        %v512 = vld [vmem:[#allocation5 + $0x1b8] sm:$0xff]
        %v513 = vld [vmem:[#allocation5 + $0x1c0] sm:$0xff]
        %v514 = vld [vmem:[#allocation5 + $0x1c8] sm:$0xff]
        %v515 = vld [vmem:[#allocation5 + $0x1d0] sm:$0xff]
        %v516 = vld [vmem:[#allocation5 + $0x1d8] sm:$0xff]
        %v517 = vld [vmem:[#allocation5 + $0x1e0] sm:$0xff]
        %v518 = vld [vmem:[#allocation5 + $0x1e8] sm:$0xff]
        %v519 = vld [vmem:[#allocation5 + $0x1f0] sm:$0xff]
        %v520 = vld [vmem:[#allocation5 + $0x1f8] sm:$0xff]
        %v521 = vld [vmem:[#allocation5 + $0x200] sm:$0xff]
        %v522 = vld [vmem:[#allocation5 + $0x208] sm:$0xff]
        %v523 = vld [vmem:[#allocation5 + $0x210] sm:$0xff]
        %v524 = vld [vmem:[#allocation5 + $0x218] sm:$0xff]
        %v525 = vld [vmem:[#allocation5 + $0x220] sm:$0xff]
        %v526 = vld [vmem:[#allocation5 + $0x228] sm:$0xff]
        %v527 = vld [vmem:[#allocation5 + $0x230] sm:$0xff]
        %v528 = vld [vmem:[#allocation5 + $0x238] sm:$0xff]
        %v529 = vld [vmem:[#allocation5 + $0x240] sm:$0xff]
        %v530 = vld [vmem:[#allocation5 + $0x248] sm:$0xff]
        %v531 = vld [vmem:[#allocation5 + $0x250] sm:$0xff]
        %v532 = vld [vmem:[#allocation5 + $0x258] sm:$0xff]
        %v533 = vld [vmem:[#allocation5 + $0x260] sm:$0xff]
        %v534 = vld [vmem:[#allocation5 + $0x268] sm:$0xff]
        %v535 = vld [vmem:[#allocation5 + $0x270] sm:$0xff]
        %v536 = vld [vmem:[#allocation5 + $0x278] sm:$0xff]
        %v537 = vld [vmem:[#allocation5 + $0x280] sm:$0xff]
        %v538 = vld [vmem:[#allocation5 + $0x288] sm:$0xff]
        %v539 = vld [vmem:[#allocation5 + $0x290] sm:$0xff]
        %v540 = vld [vmem:[#allocation5 + $0x298] sm:$0xff]
        %v541 = vld [vmem:[#allocation5 + $0x2a0] sm:$0xff]
        %v542 = vld [vmem:[#allocation5 + $0x2a8] sm:$0xff]
        %v543 = vld [vmem:[#allocation5 + $0x2b0] sm:$0xff]
        %v544 = vld [vmem:[#allocation5 + $0x2b8] sm:$0xff]
        %v545 = vld [vmem:[#allocation5 + $0x2c0] sm:$0xff]
        %v546 = vld [vmem:[#allocation5 + $0x2c8] sm:$0xff]
        %v547 = vld [vmem:[#allocation5 + $0x2d0] sm:$0xff]
        %v548 = vld [vmem:[#allocation5 + $0x2d8] sm:$0xff]
        %v549 = vld [vmem:[#allocation5 + $0x2e0] sm:$0xff]
        %v550 = vld [vmem:[#allocation5 + $0x2e8] sm:$0xff]
        %v551 = vld [vmem:[#allocation5 + $0x2f0] sm:$0xff]
        %v552 = vld [vmem:[#allocation5 + $0x2f8] sm:$0xff]
        %v553 = vld [vmem:[#allocation5 + $0x300] sm:$0xff]
        %v554 = vld [vmem:[#allocation5 + $0x308] sm:$0xff]
        %v555 = vld [vmem:[#allocation5 + $0x310] sm:$0xff]
        %v556 = vld [vmem:[#allocation5 + $0x318] sm:$0xff]
        %v557 = vld [vmem:[#allocation5 + $0x320] sm:$0xff]
        %v558 = vld [vmem:[#allocation5 + $0x328] sm:$0xff]
        %v559 = vld [vmem:[#allocation5 + $0x330] sm:$0xff]
        %v560 = vld [vmem:[#allocation5 + $0x338] sm:$0xff]
        %v561 = vld [vmem:[#allocation5 + $0x340] sm:$0xff]
        %v562 = vld [vmem:[#allocation5 + $0x348] sm:$0xff]
        %v563 = vld [vmem:[#allocation5 + $0x350] sm:$0xff]
        %v564 = vld [vmem:[#allocation5 + $0x358] sm:$0xff]
        %v565 = vld [vmem:[#allocation5 + $0x360] sm:$0xff]
        %v566 = vld [vmem:[#allocation5 + $0x368] sm:$0xff]
        %v567 = vld [vmem:[#allocation5 + $0x370] sm:$0xff]
        %v568 = vld [vmem:[#allocation5 + $0x378] sm:$0xff]
        %v569 = vld [vmem:[#allocation5 + $0x380] sm:$0xff]
        %v570 = vld [vmem:[#allocation5 + $0x388] sm:$0xff]
        %v571 = vld [vmem:[#allocation5 + $0x390] sm:$0xff]
        %v572 = vld [vmem:[#allocation5 + $0x398] sm:$0xff]
        %v573 = vld [vmem:[#allocation5 + $0x3a0] sm:$0xff]
        %v574 = vld [vmem:[#allocation5 + $0x3a8] sm:$0xff]
        %v575 = vld [vmem:[#allocation5 + $0x3b0] sm:$0xff]
        %v576 = vld [vmem:[#allocation5 + $0x3b8] sm:$0xff]
        %v577 = vld [vmem:[#allocation5 + $0x3c0] sm:$0xff]
        %v578 = vld [vmem:[#allocation5 + $0x3c8] sm:$0xff]
        %v579 = vld [vmem:[#allocation5 + $0x3d0] sm:$0xff]
        %v580 = vld [vmem:[#allocation5 + $0x3d8] sm:$0xff]
        %v581 = vld [vmem:[#allocation5 + $0x3e0] sm:$0xff]
        %v582 = vld [vmem:[#allocation5 + $0x3e8] sm:$0xff]
        %v583 = vld [vmem:[#allocation5 + $0x3f0] sm:$0xff]
        %v584 = vld [vmem:[#allocation5 + $0x3f8] sm:$0xff]
        %v585 = vld [vmem:[#allocation7] sm:$0xf]
        %v587 = vlaneseq
        %v588 = vshrl.u32 %v587, 7
        %v589 = vsub.s32 0, %v588
        %v590 = vrot.slane %v585, %v589
        %v591 = vlaneseq
        %v592 = vshrl.u32 %v591, 7
        %v593 = vsub.s32 1, %v592
        %v594 = vrot.slane %v585, %v593
        %v595 = vlaneseq
        %v596 = vshrl.u32 %v595, 7
        %v597 = vsub.s32 2, %v596
        %v598 = vrot.slane %v585, %v597
        %v599 = vlaneseq
        %v600 = vshrl.u32 %v599, 7
        %v601 = vsub.s32 3, %v600
        %v602 = vrot.slane %v585, %v601
        %607 = vmatprep.subr.mxu0 %v518
        %608 = vmatpush1.msra.mxu0 %v517
        %609 = vmatprep.subr.mxu0 %v514
        %610 = vmatpush1.msra.mxu0 %v513
        %611 = vmatprep.subr.mxu0 %v510
        %612 = vmatpush1.msra.mxu0 %v509
        %613 = vmatprep.subr.mxu0 %v506
        %614 = vmatpush1.msra.mxu0 %v505
        %615 = vmatprep.subr.mxu0 %v502
        %616 = vmatpush1.msra.mxu0 %v501
        %617 = vmatprep.subr.mxu0 %v498
        %618 = vmatpush1.msra.mxu0 %v497
        %619 = vmatprep.subr.mxu0 %v494
        %620 = vmatpush1.msra.mxu0 %v493
        %621 = vmatprep.subr.mxu0 %v490
        %622 = vmatpush1.msra.mxu0 %v489
        %623 = vmatprep.subr.mxu0 %v486
        %624 = vmatpush1.msra.mxu0 %v485
        %625 = vmatprep.subr.mxu0 %v482
        %626 = vmatpush1.msra.mxu0 %v481
        %627 = vmatprep.subr.mxu0 %v478
        %628 = vmatpush1.msra.mxu0 %v477
        %629 = vmatprep.subr.mxu0 %v474
        %630 = vmatpush1.msra.mxu0 %v473
        %631 = vmatprep.subr.mxu0 %v470
        %632 = vmatpush1.msra.mxu0 %v469
        %633 = vmatprep.subr.mxu0 %v466
        %634 = vmatpush1.msra.mxu0 %v465
        %635 = vmatprep.subr.mxu0 %v462
        %636 = vmatpush1.msra.mxu0 %v461
        %637 = vmatprep.subr.mxu0 %v458
        %638 = vmatpush1.msra.mxu0 %v457
        %639 = vmatprep.subr.mxu0 %v582
        %640 = vmatpush2.msra.mxu0 %v581
        %641 = vmatprep.subr.mxu0 %v578
        %642 = vmatpush2.msra.mxu0 %v577
        %643 = vmatprep.subr.mxu0 %v574
        %644 = vmatpush2.msra.mxu0 %v573
        %645 = vmatprep.subr.mxu0 %v570
        %646 = vmatpush2.msra.mxu0 %v569
        %647 = vmatprep.subr.mxu0 %v566
        %648 = vmatpush2.msra.mxu0 %v565
        %649 = vmatprep.subr.mxu0 %v562
        %650 = vmatpush2.msra.mxu0 %v561
        %651 = vmatprep.subr.mxu0 %v558
        %652 = vmatpush2.msra.mxu0 %v557
        %653 = vmatprep.subr.mxu0 %v554
        %654 = vmatpush2.msra.mxu0 %v553
        %655 = vmatprep.subr.mxu0 %v550
        %656 = vmatpush2.msra.mxu0 %v549
        %657 = vmatprep.subr.mxu0 %v546
        %658 = vmatpush2.msra.mxu0 %v545
        %659 = vmatprep.subr.mxu0 %v542
        %660 = vmatpush2.msra.mxu0 %v541
        %661 = vmatprep.subr.mxu0 %v538
        %662 = vmatpush2.msra.mxu0 %v537
        %663 = vmatprep.subr.mxu0 %v534
        %664 = vmatpush2.msra.mxu0 %v533
        %665 = vmatprep.subr.mxu0 %v530
        %666 = vmatpush2.msra.mxu0 %v529
        %667 = vmatprep.subr.mxu0 %v526
        %668 = vmatpush2.msra.mxu0 %v525
        %669 = vmatprep.subr.mxu0 %v522
        %670 = vmatpush2.msra.mxu0 %v521
        %671 = vmatprep.mubr.f32.mxu0 %v426
        %672 = vmatmul.mubr.f32.gmra.mxu0 %v425
        %v673 = vpop.f32.mrf.mxu0
        %v674 = vadd.f32 %v590, %v673
        %v675 = vpop.f32.mrf.mxu0
        %v676 = vadd.f32 %v594, %v675
        %677 = vmatprep.mubr.f32.mxu0 %v428
        %678 = vmatmul.mubr.f32.gmra.mxu0 %v427
        %v679 = vpop.f32.mrf.mxu0
        %v680 = vadd.f32 %v590, %v679
        %v681 = vpop.f32.mrf.mxu0
        %v682 = vadd.f32 %v594, %v681
        %683 = vmatprep.mubr.f32.mxu0 %v430
        %684 = vmatmul.mubr.f32.gmra.mxu0 %v429
        %v685 = vpop.f32.mrf.mxu0
        %v686 = vadd.f32 %v590, %v685
        %v687 = vpop.f32.mrf.mxu0
        %v688 = vadd.f32 %v594, %v687
        %689 = vmatprep.mubr.f32.mxu0 %v432
        %690 = vmatmul.mubr.f32.gmra.mxu0 %v431
        %v691 = vpop.f32.mrf.mxu0
        %v692 = vadd.f32 %v590, %v691
        %v693 = vpop.f32.mrf.mxu0
        %v694 = vadd.f32 %v594, %v693
        %695 = vmatprep.mubr.f32.mxu0 %v434
        %696 = vmatmul.mubr.f32.gmra.mxu0 %v433
        %v697 = vpop.f32.mrf.mxu0
        %v698 = vadd.f32 %v590, %v697
        %v699 = vpop.f32.mrf.mxu0
        %v700 = vadd.f32 %v594, %v699
        %701 = vmatprep.mubr.f32.mxu0 %v436
        %702 = vmatmul.mubr.f32.gmra.mxu0 %v435
        %v703 = vpop.f32.mrf.mxu0
        %v704 = vadd.f32 %v590, %v703
        %v705 = vpop.f32.mrf.mxu0
        %v706 = vadd.f32 %v594, %v705
        %707 = vmatprep.mubr.f32.mxu0 %v438
        %708 = vmatmul.mubr.f32.gmra.mxu0 %v437
        %v709 = vpop.f32.mrf.mxu0
        %v710 = vadd.f32 %v590, %v709
        %v711 = vpop.f32.mrf.mxu0
        %v712 = vadd.f32 %v594, %v711
        %713 = vmatprep.mubr.f32.mxu0 %v440
        %714 = vmatmul.mubr.f32.gmra.mxu0 %v439
        %v715 = vpop.f32.mrf.mxu0
        %v716 = vadd.f32 %v590, %v715
        %v717 = vpop.f32.mrf.mxu0
        %v718 = vadd.f32 %v594, %v717
        %719 = vmatprep.mubr.f32.mxu0 %v442
        %720 = vmatmul.mubr.f32.gmra.mxu0 %v441
        %v721 = vpop.f32.mrf.mxu0
        %v722 = vadd.f32 %v590, %v721
        %v723 = vpop.f32.mrf.mxu0
        %v724 = vadd.f32 %v594, %v723
        %725 = vmatprep.mubr.f32.mxu0 %v444
        %726 = vmatmul.mubr.f32.gmra.mxu0 %v443
        %v727 = vpop.f32.mrf.mxu0
        %v728 = vadd.f32 %v590, %v727
        %v729 = vpop.f32.mrf.mxu0
        %v730 = vadd.f32 %v594, %v729
        %731 = vmatprep.mubr.f32.mxu0 %v446
        %732 = vmatmul.mubr.f32.gmra.mxu0 %v445
        %v733 = vpop.f32.mrf.mxu0
        %v734 = vadd.f32 %v590, %v733
        %v735 = vpop.f32.mrf.mxu0
        %v736 = vadd.f32 %v594, %v735
        %737 = vmatprep.mubr.f32.mxu0 %v448
        %738 = vmatmul.mubr.f32.gmra.mxu0 %v447
        %v739 = vpop.f32.mrf.mxu0
        %v740 = vadd.f32 %v590, %v739
        %v741 = vpop.f32.mrf.mxu0
        %v742 = vadd.f32 %v594, %v741
        %743 = vmatprep.mubr.f32.mxu0 %v450
        %744 = vmatmul.mubr.f32.gmra.mxu0 %v449
        %v745 = vpop.f32.mrf.mxu0
        %v746 = vadd.f32 %v590, %v745
        %v747 = vpop.f32.mrf.mxu0
        %v748 = vadd.f32 %v594, %v747
        %749 = vmatprep.mubr.f32.mxu0 %v452
        %750 = vmatmul.mubr.f32.gmra.mxu0 %v451
        %v751 = vpop.f32.mrf.mxu0
        %v752 = vadd.f32 %v590, %v751
        %v753 = vpop.f32.mrf.mxu0
        %v754 = vadd.f32 %v594, %v753
        %755 = vmatprep.mubr.f32.mxu0 %v454
        %756 = vmatmul.mubr.f32.gmra.mxu0 %v453
        %v757 = vpop.f32.mrf.mxu0
        %v758 = vadd.f32 %v590, %v757
        %v759 = vpop.f32.mrf.mxu0
        %v760 = vadd.f32 %v594, %v759
        %761 = vmatprep.mubr.f32.mxu0 %v456
        %762 = vmatmul.mubr.f32.gmra.mxu0 %v455
        %v763 = vpop.f32.mrf.mxu0
        %v764 = vadd.f32 %v590, %v763
        %v765 = vpop.f32.mrf.mxu0
        %v766 = vadd.f32 %v594, %v765
        %767 = vdwg.mxu0
        %768 = vmatprep.subr.mxu0 %v520
        %769 = vmatpush1.msra.mxu0 %v519
        %770 = vmatprep.subr.mxu0 %v516
        %771 = vmatpush1.msra.mxu0 %v515
        %772 = vmatprep.subr.mxu0 %v512
        %773 = vmatpush1.msra.mxu0 %v511
        %774 = vmatprep.subr.mxu0 %v508
        %775 = vmatpush1.msra.mxu0 %v507
        %776 = vmatprep.subr.mxu0 %v504
        %777 = vmatpush1.msra.mxu0 %v503
        %778 = vmatprep.subr.mxu0 %v500
        %779 = vmatpush1.msra.mxu0 %v499
        %780 = vmatprep.subr.mxu0 %v496
        %781 = vmatpush1.msra.mxu0 %v495
        %782 = vmatprep.subr.mxu0 %v492
        %783 = vmatpush1.msra.mxu0 %v491
        %784 = vmatprep.subr.mxu0 %v488
        %785 = vmatpush1.msra.mxu0 %v487
        %786 = vmatprep.subr.mxu0 %v484
        %787 = vmatpush1.msra.mxu0 %v483
        %788 = vmatprep.subr.mxu0 %v480
        %789 = vmatpush1.msra.mxu0 %v479
        %790 = vmatprep.subr.mxu0 %v476
        %791 = vmatpush1.msra.mxu0 %v475
        %792 = vmatprep.subr.mxu0 %v472
        %793 = vmatpush1.msra.mxu0 %v471
        %794 = vmatprep.subr.mxu0 %v468
        %795 = vmatpush1.msra.mxu0 %v467
        %796 = vmatprep.subr.mxu0 %v464
        %797 = vmatpush1.msra.mxu0 %v463
        %798 = vmatprep.subr.mxu0 %v460
        %799 = vmatpush1.msra.mxu0 %v459
        %800 = vmatprep.subr.mxu0 %v584
        %801 = vmatpush2.msra.mxu0 %v583
        %802 = vmatprep.subr.mxu0 %v580
        %803 = vmatpush2.msra.mxu0 %v579
        %804 = vmatprep.subr.mxu0 %v576
        %805 = vmatpush2.msra.mxu0 %v575
        %806 = vmatprep.subr.mxu0 %v572
        %807 = vmatpush2.msra.mxu0 %v571
        %808 = vmatprep.subr.mxu0 %v568
        %809 = vmatpush2.msra.mxu0 %v567
        %810 = vmatprep.subr.mxu0 %v564
        %811 = vmatpush2.msra.mxu0 %v563
        %812 = vmatprep.subr.mxu0 %v560
        %813 = vmatpush2.msra.mxu0 %v559
        %814 = vmatprep.subr.mxu0 %v556
        %815 = vmatpush2.msra.mxu0 %v555
        %816 = vmatprep.subr.mxu0 %v552
        %817 = vmatpush2.msra.mxu0 %v551
        %818 = vmatprep.subr.mxu0 %v548
        %819 = vmatpush2.msra.mxu0 %v547
        %820 = vmatprep.subr.mxu0 %v544
        %821 = vmatpush2.msra.mxu0 %v543
        %822 = vmatprep.subr.mxu0 %v540
        %823 = vmatpush2.msra.mxu0 %v539
        %824 = vmatprep.subr.mxu0 %v536
        %825 = vmatpush2.msra.mxu0 %v535
        %826 = vmatprep.subr.mxu0 %v532
        %827 = vmatpush2.msra.mxu0 %v531
        %828 = vmatprep.subr.mxu0 %v528
        %829 = vmatpush2.msra.mxu0 %v527
        %830 = vmatprep.subr.mxu0 %v524
        %831 = vmatpush2.msra.mxu0 %v523
        %832 = vmatprep.mubr.f32.mxu0 %v426
        %833 = vmatmul.mubr.f32.gmra.mxu0 %v425
        %v834 = vpop.f32.mrf.mxu0
        %v835 = vadd.f32 %v598, %v834
        %v836 = vpop.f32.mrf.mxu0
        %v837 = vadd.f32 %v602, %v836
        %838 = vmatprep.mubr.f32.mxu0 %v428
        %839 = vmatmul.mubr.f32.gmra.mxu0 %v427
        %v840 = vpop.f32.mrf.mxu0
        %v841 = vadd.f32 %v598, %v840
        %v842 = vpop.f32.mrf.mxu0
        %v843 = vadd.f32 %v602, %v842
        %844 = vmatprep.mubr.f32.mxu0 %v430
        %845 = vmatmul.mubr.f32.gmra.mxu0 %v429
        %v846 = vpop.f32.mrf.mxu0
        %v847 = vadd.f32 %v598, %v846
        %v848 = vpop.f32.mrf.mxu0
        %v849 = vadd.f32 %v602, %v848
        %850 = vmatprep.mubr.f32.mxu0 %v432
        %851 = vmatmul.mubr.f32.gmra.mxu0 %v431
        %v852 = vpop.f32.mrf.mxu0
        %v853 = vadd.f32 %v598, %v852
        %v854 = vpop.f32.mrf.mxu0
        %v855 = vadd.f32 %v602, %v854
        %856 = vmatprep.mubr.f32.mxu0 %v434
        %857 = vmatmul.mubr.f32.gmra.mxu0 %v433
        %v858 = vpop.f32.mrf.mxu0
        %v859 = vadd.f32 %v598, %v858
        %v860 = vpop.f32.mrf.mxu0
        %v861 = vadd.f32 %v602, %v860
        %862 = vmatprep.mubr.f32.mxu0 %v436
        %863 = vmatmul.mubr.f32.gmra.mxu0 %v435
        %v864 = vpop.f32.mrf.mxu0
        %v865 = vadd.f32 %v598, %v864
        %v866 = vpop.f32.mrf.mxu0
        %v867 = vadd.f32 %v602, %v866
        %868 = vmatprep.mubr.f32.mxu0 %v438
        %869 = vmatmul.mubr.f32.gmra.mxu0 %v437
        %v870 = vpop.f32.mrf.mxu0
        %v871 = vadd.f32 %v598, %v870
        %v872 = vpop.f32.mrf.mxu0
        %v873 = vadd.f32 %v602, %v872
        %874 = vmatprep.mubr.f32.mxu0 %v440
        %875 = vmatmul.mubr.f32.gmra.mxu0 %v439
        %v876 = vpop.f32.mrf.mxu0
        %v877 = vadd.f32 %v598, %v876
        %v878 = vpop.f32.mrf.mxu0
        %v879 = vadd.f32 %v602, %v878
        %880 = vmatprep.mubr.f32.mxu0 %v442
        %881 = vmatmul.mubr.f32.gmra.mxu0 %v441
        %v882 = vpop.f32.mrf.mxu0
        %v883 = vadd.f32 %v598, %v882
        %v884 = vpop.f32.mrf.mxu0
        %v885 = vadd.f32 %v602, %v884
        %886 = vmatprep.mubr.f32.mxu0 %v444
        %887 = vmatmul.mubr.f32.gmra.mxu0 %v443
        %v888 = vpop.f32.mrf.mxu0
        %v889 = vadd.f32 %v598, %v888
        %v890 = vpop.f32.mrf.mxu0
        %v891 = vadd.f32 %v602, %v890
        %892 = vmatprep.mubr.f32.mxu0 %v446
        %893 = vmatmul.mubr.f32.gmra.mxu0 %v445
        %v894 = vpop.f32.mrf.mxu0
        %v895 = vadd.f32 %v598, %v894
        %v896 = vpop.f32.mrf.mxu0
        %v897 = vadd.f32 %v602, %v896
        %898 = vmatprep.mubr.f32.mxu0 %v448
        %899 = vmatmul.mubr.f32.gmra.mxu0 %v447
        %v900 = vpop.f32.mrf.mxu0
        %v901 = vadd.f32 %v598, %v900
        %v902 = vpop.f32.mrf.mxu0
        %v903 = vadd.f32 %v602, %v902
        %904 = vmatprep.mubr.f32.mxu0 %v450
        %905 = vmatmul.mubr.f32.gmra.mxu0 %v449
        %v906 = vpop.f32.mrf.mxu0
        %v907 = vadd.f32 %v598, %v906
        %v908 = vpop.f32.mrf.mxu0
        %v909 = vadd.f32 %v602, %v908
        %910 = vmatprep.mubr.f32.mxu0 %v452
        %911 = vmatmul.mubr.f32.gmra.mxu0 %v451
        %v912 = vpop.f32.mrf.mxu0
        %v913 = vadd.f32 %v598, %v912
        %v914 = vpop.f32.mrf.mxu0
        %v915 = vadd.f32 %v602, %v914
        %916 = vmatprep.mubr.f32.mxu0 %v454
        %917 = vmatmul.mubr.f32.gmra.mxu0 %v453
        %v918 = vpop.f32.mrf.mxu0
        %v919 = vadd.f32 %v598, %v918
        %v920 = vpop.f32.mrf.mxu0
        %v921 = vadd.f32 %v602, %v920
        %922 = vmatprep.mubr.f32.mxu0 %v456
        %923 = vmatmul.mubr.f32.gmra.mxu0 %v455
        %v924 = vpop.f32.mrf.mxu0
        %v925 = vadd.f32 %v598, %v924
        %v926 = vpop.f32.mrf.mxu0
        %v927 = vadd.f32 %v602, %v926
        %928 = vdwg.mxu0
        %v929 = vmax.f32 %v674, 0.0
        %v930 = vmax.f32 %v676, 0.0
        %v931 = vmax.f32 %v835, 0.0
        %v932 = vmax.f32 %v837, 0.0
        %v933 = vmax.f32 %v680, 0.0
        %v934 = vmax.f32 %v682, 0.0
        %v935 = vmax.f32 %v841, 0.0
        %v936 = vmax.f32 %v843, 0.0
        %v937 = vmax.f32 %v686, 0.0
        %v938 = vmax.f32 %v688, 0.0
        %v939 = vmax.f32 %v847, 0.0
        %v940 = vmax.f32 %v849, 0.0
        %v941 = vmax.f32 %v692, 0.0
        %v942 = vmax.f32 %v694, 0.0
        %v943 = vmax.f32 %v853, 0.0
        %v944 = vmax.f32 %v855, 0.0
        %v945 = vmax.f32 %v698, 0.0
        %v946 = vmax.f32 %v700, 0.0
        %v947 = vmax.f32 %v859, 0.0
        %v948 = vmax.f32 %v861, 0.0
        %v949 = vmax.f32 %v704, 0.0
        %v950 = vmax.f32 %v706, 0.0
        %v951 = vmax.f32 %v865, 0.0
        %v952 = vmax.f32 %v867, 0.0
        %v953 = vmax.f32 %v710, 0.0
        %v954 = vmax.f32 %v712, 0.0
        %v955 = vmax.f32 %v871, 0.0
        %v956 = vmax.f32 %v873, 0.0
        %v957 = vmax.f32 %v716, 0.0
        %v958 = vmax.f32 %v718, 0.0
        %v959 = vmax.f32 %v877, 0.0
        %v960 = vmax.f32 %v879, 0.0
        %v961 = vmax.f32 %v722, 0.0
        %v962 = vmax.f32 %v724, 0.0
        %v963 = vmax.f32 %v883, 0.0
        %v964 = vmax.f32 %v885, 0.0
        %v965 = vmax.f32 %v728, 0.0
        %v966 = vmax.f32 %v730, 0.0
        %v967 = vmax.f32 %v889, 0.0
        %v968 = vmax.f32 %v891, 0.0
        %v969 = vmax.f32 %v734, 0.0
        %v970 = vmax.f32 %v736, 0.0
        %v971 = vmax.f32 %v895, 0.0
        %v972 = vmax.f32 %v897, 0.0
        %v973 = vmax.f32 %v740, 0.0
        %v974 = vmax.f32 %v742, 0.0
        %v975 = vmax.f32 %v901, 0.0
        %v976 = vmax.f32 %v903, 0.0
        %v977 = vmax.f32 %v746, 0.0
        %v978 = vmax.f32 %v748, 0.0
        %v979 = vmax.f32 %v907, 0.0
        %v980 = vmax.f32 %v909, 0.0
        %v981 = vmax.f32 %v752, 0.0
        %v982 = vmax.f32 %v754, 0.0
        %v983 = vmax.f32 %v913, 0.0
        %v984 = vmax.f32 %v915, 0.0
        %v985 = vmax.f32 %v758, 0.0
        %v986 = vmax.f32 %v760, 0.0
        %v987 = vmax.f32 %v919, 0.0
        %v988 = vmax.f32 %v921, 0.0
        %v989 = vmax.f32 %v764, 0.0
        %v990 = vmax.f32 %v766, 0.0
        %v991 = vmax.f32 %v925, 0.0
        %v992 = vmax.f32 %v927, 0.0
        %v993 = vld [vmem:[#allocation8] sm:$0xff]
        %v994 = vld [vmem:[#allocation8 + $0x8] sm:$0xff]
        %v995 = vld [vmem:[#allocation8 + $0x10] sm:$0xff]
        %v996 = vld [vmem:[#allocation8 + $0x18] sm:$0xff]
        %v997 = vld [vmem:[#allocation8 + $0x20] sm:$0xff]
        %v998 = vld [vmem:[#allocation8 + $0x28] sm:$0xff]
        %v999 = vld [vmem:[#allocation8 + $0x30] sm:$0xff]
        %v1000 = vld [vmem:[#allocation8 + $0x38] sm:$0xff]
        %v1001 = vld [vmem:[#allocation8 + $0x40] sm:$0xff]
        %v1002 = vld [vmem:[#allocation8 + $0x48] sm:$0xff]
        %v1003 = vld [vmem:[#allocation8 + $0x50] sm:$0xff]
        %v1004 = vld [vmem:[#allocation8 + $0x58] sm:$0xff]
        %v1005 = vld [vmem:[#allocation8 + $0x60] sm:$0xff]
        %v1006 = vld [vmem:[#allocation8 + $0x68] sm:$0xff]
        %v1007 = vld [vmem:[#allocation8 + $0x70] sm:$0xff]
        %v1008 = vld [vmem:[#allocation8 + $0x78] sm:$0xff]
        %v1009 = vld [vmem:[#allocation8 + $0x80] sm:$0xff]
        %v1010 = vld [vmem:[#allocation8 + $0x88] sm:$0xff]
        %v1011 = vld [vmem:[#allocation8 + $0x90] sm:$0xff]
        %v1012 = vld [vmem:[#allocation8 + $0x98] sm:$0xff]
        %v1013 = vld [vmem:[#allocation8 + $0xa0] sm:$0xff]
        %v1014 = vld [vmem:[#allocation8 + $0xa8] sm:$0xff]
        %v1015 = vld [vmem:[#allocation8 + $0xb0] sm:$0xff]
        %v1016 = vld [vmem:[#allocation8 + $0xb8] sm:$0xff]
        %v1017 = vld [vmem:[#allocation8 + $0xc0] sm:$0xff]
        %v1018 = vld [vmem:[#allocation8 + $0xc8] sm:$0xff]
        %v1019 = vld [vmem:[#allocation8 + $0xd0] sm:$0xff]
        %v1020 = vld [vmem:[#allocation8 + $0xd8] sm:$0xff]
        %v1021 = vld [vmem:[#allocation8 + $0xe0] sm:$0xff]
        %v1022 = vld [vmem:[#allocation8 + $0xe8] sm:$0xff]
        %v1023 = vld [vmem:[#allocation8 + $0xf0] sm:$0xff]
        %v1024 = vld [vmem:[#allocation8 + $0xf8] sm:$0xff]
        %v1025 = vld [vmem:[#allocation8 + $0x100] sm:$0xff]
        %v1026 = vld [vmem:[#allocation8 + $0x108] sm:$0xff]
        %v1027 = vld [vmem:[#allocation8 + $0x110] sm:$0xff]
        %v1028 = vld [vmem:[#allocation8 + $0x118] sm:$0xff]
        %v1029 = vld [vmem:[#allocation8 + $0x120] sm:$0xff]
        %v1030 = vld [vmem:[#allocation8 + $0x128] sm:$0xff]
        %v1031 = vld [vmem:[#allocation8 + $0x130] sm:$0xff]
        %v1032 = vld [vmem:[#allocation8 + $0x138] sm:$0xff]
        %v1033 = vld [vmem:[#allocation8 + $0x140] sm:$0xff]
        %v1034 = vld [vmem:[#allocation8 + $0x148] sm:$0xff]
        %v1035 = vld [vmem:[#allocation8 + $0x150] sm:$0xff]
        %v1036 = vld [vmem:[#allocation8 + $0x158] sm:$0xff]
        %v1037 = vld [vmem:[#allocation8 + $0x160] sm:$0xff]
        %v1038 = vld [vmem:[#allocation8 + $0x168] sm:$0xff]
        %v1039 = vld [vmem:[#allocation8 + $0x170] sm:$0xff]
        %v1040 = vld [vmem:[#allocation8 + $0x178] sm:$0xff]
        %v1041 = vld [vmem:[#allocation8 + $0x180] sm:$0xff]
        %v1042 = vld [vmem:[#allocation8 + $0x188] sm:$0xff]
        %v1043 = vld [vmem:[#allocation8 + $0x190] sm:$0xff]
        %v1044 = vld [vmem:[#allocation8 + $0x198] sm:$0xff]
        %v1045 = vld [vmem:[#allocation8 + $0x1a0] sm:$0xff]
        %v1046 = vld [vmem:[#allocation8 + $0x1a8] sm:$0xff]
        %v1047 = vld [vmem:[#allocation8 + $0x1b0] sm:$0xff]
        %v1048 = vld [vmem:[#allocation8 + $0x1b8] sm:$0xff]
        %v1049 = vld [vmem:[#allocation8 + $0x1c0] sm:$0xff]
        %v1050 = vld [vmem:[#allocation8 + $0x1c8] sm:$0xff]
        %v1051 = vld [vmem:[#allocation8 + $0x1d0] sm:$0xff]
        %v1052 = vld [vmem:[#allocation8 + $0x1d8] sm:$0xff]
        %v1053 = vld [vmem:[#allocation8 + $0x1e0] sm:$0xff]
        %v1054 = vld [vmem:[#allocation8 + $0x1e8] sm:$0xff]
        %v1055 = vld [vmem:[#allocation8 + $0x1f0] sm:$0xff]
        %v1056 = vld [vmem:[#allocation8 + $0x1f8] sm:$0xff]
        %v1057 = vld [vmem:[#allocation8 + $0x200] sm:$0xff]
        %v1058 = vld [vmem:[#allocation8 + $0x208] sm:$0xff]
        %v1059 = vld [vmem:[#allocation8 + $0x210] sm:$0xff]
        %v1060 = vld [vmem:[#allocation8 + $0x218] sm:$0xff]
        %v1061 = vld [vmem:[#allocation8 + $0x220] sm:$0xff]
        %v1062 = vld [vmem:[#allocation8 + $0x228] sm:$0xff]
        %v1063 = vld [vmem:[#allocation8 + $0x230] sm:$0xff]
        %v1064 = vld [vmem:[#allocation8 + $0x238] sm:$0xff]
        %v1065 = vld [vmem:[#allocation8 + $0x240] sm:$0xff]
        %v1066 = vld [vmem:[#allocation8 + $0x248] sm:$0xff]
        %v1067 = vld [vmem:[#allocation8 + $0x250] sm:$0xff]
        %v1068 = vld [vmem:[#allocation8 + $0x258] sm:$0xff]
        %v1069 = vld [vmem:[#allocation8 + $0x260] sm:$0xff]
        %v1070 = vld [vmem:[#allocation8 + $0x268] sm:$0xff]
        %v1071 = vld [vmem:[#allocation8 + $0x270] sm:$0xff]
        %v1072 = vld [vmem:[#allocation8 + $0x278] sm:$0xff]
        %v1073 = vld [vmem:[#allocation8 + $0x280] sm:$0xff]
        %v1074 = vld [vmem:[#allocation8 + $0x288] sm:$0xff]
        %v1075 = vld [vmem:[#allocation8 + $0x290] sm:$0xff]
        %v1076 = vld [vmem:[#allocation8 + $0x298] sm:$0xff]
        %v1077 = vld [vmem:[#allocation8 + $0x2a0] sm:$0xff]
        %v1078 = vld [vmem:[#allocation8 + $0x2a8] sm:$0xff]
        %v1079 = vld [vmem:[#allocation8 + $0x2b0] sm:$0xff]
        %v1080 = vld [vmem:[#allocation8 + $0x2b8] sm:$0xff]
        %v1081 = vld [vmem:[#allocation8 + $0x2c0] sm:$0xff]
        %v1082 = vld [vmem:[#allocation8 + $0x2c8] sm:$0xff]
        %v1083 = vld [vmem:[#allocation8 + $0x2d0] sm:$0xff]
        %v1084 = vld [vmem:[#allocation8 + $0x2d8] sm:$0xff]
        %v1085 = vld [vmem:[#allocation8 + $0x2e0] sm:$0xff]
        %v1086 = vld [vmem:[#allocation8 + $0x2e8] sm:$0xff]
        %v1087 = vld [vmem:[#allocation8 + $0x2f0] sm:$0xff]
        %v1088 = vld [vmem:[#allocation8 + $0x2f8] sm:$0xff]
        %v1089 = vld [vmem:[#allocation8 + $0x300] sm:$0xff]
        %v1090 = vld [vmem:[#allocation8 + $0x308] sm:$0xff]
        %v1091 = vld [vmem:[#allocation8 + $0x310] sm:$0xff]
        %v1092 = vld [vmem:[#allocation8 + $0x318] sm:$0xff]
        %v1093 = vld [vmem:[#allocation8 + $0x320] sm:$0xff]
        %v1094 = vld [vmem:[#allocation8 + $0x328] sm:$0xff]
        %v1095 = vld [vmem:[#allocation8 + $0x330] sm:$0xff]
        %v1096 = vld [vmem:[#allocation8 + $0x338] sm:$0xff]
        %v1097 = vld [vmem:[#allocation8 + $0x340] sm:$0xff]
        %v1098 = vld [vmem:[#allocation8 + $0x348] sm:$0xff]
        %v1099 = vld [vmem:[#allocation8 + $0x350] sm:$0xff]
        %v1100 = vld [vmem:[#allocation8 + $0x358] sm:$0xff]
        %v1101 = vld [vmem:[#allocation8 + $0x360] sm:$0xff]
        %v1102 = vld [vmem:[#allocation8 + $0x368] sm:$0xff]
        %v1103 = vld [vmem:[#allocation8 + $0x370] sm:$0xff]
        %v1104 = vld [vmem:[#allocation8 + $0x378] sm:$0xff]
        %v1105 = vld [vmem:[#allocation8 + $0x380] sm:$0xff]
        %v1106 = vld [vmem:[#allocation8 + $0x388] sm:$0xff]
        %v1107 = vld [vmem:[#allocation8 + $0x390] sm:$0xff]
        %v1108 = vld [vmem:[#allocation8 + $0x398] sm:$0xff]
        %v1109 = vld [vmem:[#allocation8 + $0x3a0] sm:$0xff]
        %v1110 = vld [vmem:[#allocation8 + $0x3a8] sm:$0xff]
        %v1111 = vld [vmem:[#allocation8 + $0x3b0] sm:$0xff]
        %v1112 = vld [vmem:[#allocation8 + $0x3b8] sm:$0xff]
        %v1113 = vld [vmem:[#allocation8 + $0x3c0] sm:$0xff]
        %v1114 = vld [vmem:[#allocation8 + $0x3c8] sm:$0xff]
        %v1115 = vld [vmem:[#allocation8 + $0x3d0] sm:$0xff]
        %v1116 = vld [vmem:[#allocation8 + $0x3d8] sm:$0xff]
        %v1117 = vld [vmem:[#allocation8 + $0x3e0] sm:$0xff]
        %v1118 = vld [vmem:[#allocation8 + $0x3e8] sm:$0xff]
        %v1119 = vld [vmem:[#allocation8 + $0x3f0] sm:$0xff]
        %v1120 = vld [vmem:[#allocation8 + $0x3f8] sm:$0xff]
        %v1121 = vld [vmem:[%s4] sm:$0x3]
        %v1123 = vlaneseq
        %v1124 = vshrl.u32 %v1123, 7
        %v1125 = vsub.s32 0, %v1124
        %v1126 = vrot.slane %v1121, %v1125
        %v1127 = vlaneseq
        %v1128 = vshrl.u32 %v1127, 7
        %v1129 = vsub.s32 1, %v1128
        %v1130 = vrot.slane %v1121, %v1129
        %1133 = vmatprep.subr.mxu0 %v1024
        %1134 = vmatpush1.msra.mxu0 %v1023
        %1135 = vmatprep.subr.mxu0 %v1022
        %1136 = vmatpush1.msra.mxu0 %v1021
        %1137 = vmatprep.subr.mxu0 %v1020
        %1138 = vmatpush1.msra.mxu0 %v1019
        %1139 = vmatprep.subr.mxu0 %v1018
        %1140 = vmatpush1.msra.mxu0 %v1017
        %1141 = vmatprep.subr.mxu0 %v1016
        %1142 = vmatpush1.msra.mxu0 %v1015
        %1143 = vmatprep.subr.mxu0 %v1014
        %1144 = vmatpush1.msra.mxu0 %v1013
        %1145 = vmatprep.subr.mxu0 %v1012
        %1146 = vmatpush1.msra.mxu0 %v1011
        %1147 = vmatprep.subr.mxu0 %v1010
        %1148 = vmatpush1.msra.mxu0 %v1009
        %1149 = vmatprep.subr.mxu0 %v1008
        %1150 = vmatpush1.msra.mxu0 %v1007
        %1151 = vmatprep.subr.mxu0 %v1006
        %1152 = vmatpush1.msra.mxu0 %v1005
        %1153 = vmatprep.subr.mxu0 %v1004
        %1154 = vmatpush1.msra.mxu0 %v1003
        %1155 = vmatprep.subr.mxu0 %v1002
        %1156 = vmatpush1.msra.mxu0 %v1001
        %1157 = vmatprep.subr.mxu0 %v1000
        %1158 = vmatpush1.msra.mxu0 %v999
        %1159 = vmatprep.subr.mxu0 %v998
        %1160 = vmatpush1.msra.mxu0 %v997
        %1161 = vmatprep.subr.mxu0 %v996
        %1162 = vmatpush1.msra.mxu0 %v995
        %1163 = vmatprep.subr.mxu0 %v994
        %1164 = vmatpush1.msra.mxu0 %v993
        %1165 = vmatprep.subr.mxu0 %v1056
        %1166 = vmatpush2.msra.mxu0 %v1055
        %1167 = vmatprep.subr.mxu0 %v1054
        %1168 = vmatpush2.msra.mxu0 %v1053
        %1169 = vmatprep.subr.mxu0 %v1052
        %1170 = vmatpush2.msra.mxu0 %v1051
        %1171 = vmatprep.subr.mxu0 %v1050
        %1172 = vmatpush2.msra.mxu0 %v1049
        %1173 = vmatprep.subr.mxu0 %v1048
        %1174 = vmatpush2.msra.mxu0 %v1047
        %1175 = vmatprep.subr.mxu0 %v1046
        %1176 = vmatpush2.msra.mxu0 %v1045
        %1177 = vmatprep.subr.mxu0 %v1044
        %1178 = vmatpush2.msra.mxu0 %v1043
        %1179 = vmatprep.subr.mxu0 %v1042
        %1180 = vmatpush2.msra.mxu0 %v1041
        %1181 = vmatprep.subr.mxu0 %v1040
        %1182 = vmatpush2.msra.mxu0 %v1039
        %1183 = vmatprep.subr.mxu0 %v1038
        %1184 = vmatpush2.msra.mxu0 %v1037
        %1185 = vmatprep.subr.mxu0 %v1036
        %1186 = vmatpush2.msra.mxu0 %v1035
        %1187 = vmatprep.subr.mxu0 %v1034
        %1188 = vmatpush2.msra.mxu0 %v1033
        %1189 = vmatprep.subr.mxu0 %v1032
        %1190 = vmatpush2.msra.mxu0 %v1031
        %1191 = vmatprep.subr.mxu0 %v1030
        %1192 = vmatpush2.msra.mxu0 %v1029
        %1193 = vmatprep.subr.mxu0 %v1028
        %1194 = vmatpush2.msra.mxu0 %v1027
        %1195 = vmatprep.subr.mxu0 %v1026
        %1196 = vmatpush2.msra.mxu0 %v1025
        %1197 = vmatprep.mubr.f32.mxu0 %v930
        %1198 = vmatmul.mubr.f32.gmra.mxu0 %v929
        %v1199 = vpop.f32.mrf.mxu0
        %v1200 = vadd.f32 %v1126, %v1199
        %v1201 = vpop.f32.mrf.mxu0
        %v1202 = vadd.f32 %v1130, %v1201
        %1203 = vmatprep.mubr.f32.mxu0 %v934
        %1204 = vmatmul.mubr.f32.gmra.mxu0 %v933
        %v1205 = vpop.f32.mrf.mxu0
        %v1206 = vadd.f32 %v1126, %v1205
        %v1207 = vpop.f32.mrf.mxu0
        %v1208 = vadd.f32 %v1130, %v1207
        %1209 = vmatprep.mubr.f32.mxu0 %v938
        %1210 = vmatmul.mubr.f32.gmra.mxu0 %v937
        %v1211 = vpop.f32.mrf.mxu0
        %v1212 = vadd.f32 %v1126, %v1211
        %v1213 = vpop.f32.mrf.mxu0
        %v1214 = vadd.f32 %v1130, %v1213
        %1215 = vmatprep.mubr.f32.mxu0 %v942
        %1216 = vmatmul.mubr.f32.gmra.mxu0 %v941
        %v1217 = vpop.f32.mrf.mxu0
        %v1218 = vadd.f32 %v1126, %v1217
        %v1219 = vpop.f32.mrf.mxu0
        %v1220 = vadd.f32 %v1130, %v1219
        %1221 = vmatprep.mubr.f32.mxu0 %v946
        %1222 = vmatmul.mubr.f32.gmra.mxu0 %v945
        %v1223 = vpop.f32.mrf.mxu0
        %v1224 = vadd.f32 %v1126, %v1223
        %v1225 = vpop.f32.mrf.mxu0
        %v1226 = vadd.f32 %v1130, %v1225
        %1227 = vmatprep.mubr.f32.mxu0 %v950
        %1228 = vmatmul.mubr.f32.gmra.mxu0 %v949
        %v1229 = vpop.f32.mrf.mxu0
        %v1230 = vadd.f32 %v1126, %v1229
        %v1231 = vpop.f32.mrf.mxu0
        %v1232 = vadd.f32 %v1130, %v1231
        %1233 = vmatprep.mubr.f32.mxu0 %v954
        %1234 = vmatmul.mubr.f32.gmra.mxu0 %v953
        %v1235 = vpop.f32.mrf.mxu0
        %v1236 = vadd.f32 %v1126, %v1235
        %v1237 = vpop.f32.mrf.mxu0
        %v1238 = vadd.f32 %v1130, %v1237
        %1239 = vmatprep.mubr.f32.mxu0 %v958
        %1240 = vmatmul.mubr.f32.gmra.mxu0 %v957
        %v1241 = vpop.f32.mrf.mxu0
        %v1242 = vadd.f32 %v1126, %v1241
        %v1243 = vpop.f32.mrf.mxu0
        %v1244 = vadd.f32 %v1130, %v1243
        %1245 = vmatprep.mubr.f32.mxu0 %v962
        %1246 = vmatmul.mubr.f32.gmra.mxu0 %v961
        %v1247 = vpop.f32.mrf.mxu0
        %v1248 = vadd.f32 %v1126, %v1247
        %v1249 = vpop.f32.mrf.mxu0
        %v1250 = vadd.f32 %v1130, %v1249
        %1251 = vmatprep.mubr.f32.mxu0 %v966
        %1252 = vmatmul.mubr.f32.gmra.mxu0 %v965
        %v1253 = vpop.f32.mrf.mxu0
        %v1254 = vadd.f32 %v1126, %v1253
        %v1255 = vpop.f32.mrf.mxu0
        %v1256 = vadd.f32 %v1130, %v1255
        %1257 = vmatprep.mubr.f32.mxu0 %v970
        %1258 = vmatmul.mubr.f32.gmra.mxu0 %v969
        %v1259 = vpop.f32.mrf.mxu0
        %v1260 = vadd.f32 %v1126, %v1259
        %v1261 = vpop.f32.mrf.mxu0
        %v1262 = vadd.f32 %v1130, %v1261
        %1263 = vmatprep.mubr.f32.mxu0 %v974
        %1264 = vmatmul.mubr.f32.gmra.mxu0 %v973
        %v1265 = vpop.f32.mrf.mxu0
        %v1266 = vadd.f32 %v1126, %v1265
        %v1267 = vpop.f32.mrf.mxu0
        %v1268 = vadd.f32 %v1130, %v1267
        %1269 = vmatprep.mubr.f32.mxu0 %v978
        %1270 = vmatmul.mubr.f32.gmra.mxu0 %v977
        %v1271 = vpop.f32.mrf.mxu0
        %v1272 = vadd.f32 %v1126, %v1271
        %v1273 = vpop.f32.mrf.mxu0
        %v1274 = vadd.f32 %v1130, %v1273
        %1275 = vmatprep.mubr.f32.mxu0 %v982
        %1276 = vmatmul.mubr.f32.gmra.mxu0 %v981
        %v1277 = vpop.f32.mrf.mxu0
        %v1278 = vadd.f32 %v1126, %v1277
        %v1279 = vpop.f32.mrf.mxu0
        %v1280 = vadd.f32 %v1130, %v1279
        %1281 = vmatprep.mubr.f32.mxu0 %v986
        %1282 = vmatmul.mubr.f32.gmra.mxu0 %v985
        %v1283 = vpop.f32.mrf.mxu0
        %v1284 = vadd.f32 %v1126, %v1283
        %v1285 = vpop.f32.mrf.mxu0
        %v1286 = vadd.f32 %v1130, %v1285
        %1287 = vmatprep.mubr.f32.mxu0 %v990
        %1288 = vmatmul.mubr.f32.gmra.mxu0 %v989
        %v1289 = vpop.f32.mrf.mxu0
        %v1290 = vadd.f32 %v1126, %v1289
        %v1291 = vpop.f32.mrf.mxu0
        %v1292 = vadd.f32 %v1130, %v1291
        %1293 = vdwg.mxu0
        %1294 = vmatprep.subr.mxu0 %v1088
        %1295 = vmatpush1.msra.mxu0 %v1087
        %1296 = vmatprep.subr.mxu0 %v1086
        %1297 = vmatpush1.msra.mxu0 %v1085
        %1298 = vmatprep.subr.mxu0 %v1084
        %1299 = vmatpush1.msra.mxu0 %v1083
        %1300 = vmatprep.subr.mxu0 %v1082
        %1301 = vmatpush1.msra.mxu0 %v1081
        %1302 = vmatprep.subr.mxu0 %v1080
        %1303 = vmatpush1.msra.mxu0 %v1079
        %1304 = vmatprep.subr.mxu0 %v1078
        %1305 = vmatpush1.msra.mxu0 %v1077
        %1306 = vmatprep.subr.mxu0 %v1076
        %1307 = vmatpush1.msra.mxu0 %v1075
        %1308 = vmatprep.subr.mxu0 %v1074
        %1309 = vmatpush1.msra.mxu0 %v1073
        %1310 = vmatprep.subr.mxu0 %v1072
        %1311 = vmatpush1.msra.mxu0 %v1071
        %1312 = vmatprep.subr.mxu0 %v1070
        %1313 = vmatpush1.msra.mxu0 %v1069
        %1314 = vmatprep.subr.mxu0 %v1068
        %1315 = vmatpush1.msra.mxu0 %v1067
        %1316 = vmatprep.subr.mxu0 %v1066
        %1317 = vmatpush1.msra.mxu0 %v1065
        %1318 = vmatprep.subr.mxu0 %v1064
        %1319 = vmatpush1.msra.mxu0 %v1063
        %1320 = vmatprep.subr.mxu0 %v1062
        %1321 = vmatpush1.msra.mxu0 %v1061
        %1322 = vmatprep.subr.mxu0 %v1060
        %1323 = vmatpush1.msra.mxu0 %v1059
        %1324 = vmatprep.subr.mxu0 %v1058
        %1325 = vmatpush1.msra.mxu0 %v1057
        %1326 = vmatprep.subr.mxu0 %v1120
        %1327 = vmatpush2.msra.mxu0 %v1119
        %1328 = vmatprep.subr.mxu0 %v1118
        %1329 = vmatpush2.msra.mxu0 %v1117
        %1330 = vmatprep.subr.mxu0 %v1116
        %1331 = vmatpush2.msra.mxu0 %v1115
        %1332 = vmatprep.subr.mxu0 %v1114
        %1333 = vmatpush2.msra.mxu0 %v1113
        %1334 = vmatprep.subr.mxu0 %v1112
        %1335 = vmatpush2.msra.mxu0 %v1111
        %1336 = vmatprep.subr.mxu0 %v1110
        %1337 = vmatpush2.msra.mxu0 %v1109
        %1338 = vmatprep.subr.mxu0 %v1108
        %1339 = vmatpush2.msra.mxu0 %v1107
        %1340 = vmatprep.subr.mxu0 %v1106
        %1341 = vmatpush2.msra.mxu0 %v1105
        %1342 = vmatprep.subr.mxu0 %v1104
        %1343 = vmatpush2.msra.mxu0 %v1103
        %1344 = vmatprep.subr.mxu0 %v1102
        %1345 = vmatpush2.msra.mxu0 %v1101
        %1346 = vmatprep.subr.mxu0 %v1100
        %1347 = vmatpush2.msra.mxu0 %v1099
        %1348 = vmatprep.subr.mxu0 %v1098
        %1349 = vmatpush2.msra.mxu0 %v1097
        %1350 = vmatprep.subr.mxu0 %v1096
        %1351 = vmatpush2.msra.mxu0 %v1095
        %1352 = vmatprep.subr.mxu0 %v1094
        %1353 = vmatpush2.msra.mxu0 %v1093
        %1354 = vmatprep.subr.mxu0 %v1092
        %1355 = vmatpush2.msra.mxu0 %v1091
        %1356 = vmatprep.subr.mxu0 %v1090
        %1357 = vmatpush2.msra.mxu0 %v1089
        %1358 = vmatprep.mubr.f32.mxu0 %v932
        %1359 = vmatmul.mubr.f32.gmra.mxu0 %v931
        %v1360 = vpop.f32.mrf.mxu0
        %v1361 = vadd.f32 %v1200, %v1360
        %v1362 = vpop.f32.mrf.mxu0
        %v1363 = vadd.f32 %v1202, %v1362
        %1364 = vmatprep.mubr.f32.mxu0 %v936
        %1365 = vmatmul.mubr.f32.gmra.mxu0 %v935
        %v1366 = vpop.f32.mrf.mxu0
        %v1367 = vadd.f32 %v1206, %v1366
        %v1368 = vpop.f32.mrf.mxu0
        %v1369 = vadd.f32 %v1208, %v1368
        %1370 = vmatprep.mubr.f32.mxu0 %v940
        %1371 = vmatmul.mubr.f32.gmra.mxu0 %v939
        %v1372 = vpop.f32.mrf.mxu0
        %v1373 = vadd.f32 %v1212, %v1372
        %v1374 = vpop.f32.mrf.mxu0
        %v1375 = vadd.f32 %v1214, %v1374
        %1376 = vmatprep.mubr.f32.mxu0 %v944
        %1377 = vmatmul.mubr.f32.gmra.mxu0 %v943
        %v1378 = vpop.f32.mrf.mxu0
        %v1379 = vadd.f32 %v1218, %v1378
        %v1380 = vpop.f32.mrf.mxu0
        %v1381 = vadd.f32 %v1220, %v1380
        %1382 = vmatprep.mubr.f32.mxu0 %v948
        %1383 = vmatmul.mubr.f32.gmra.mxu0 %v947
        %v1384 = vpop.f32.mrf.mxu0
        %v1385 = vadd.f32 %v1224, %v1384
        %v1386 = vpop.f32.mrf.mxu0
        %v1387 = vadd.f32 %v1226, %v1386
        %1388 = vmatprep.mubr.f32.mxu0 %v952
        %1389 = vmatmul.mubr.f32.gmra.mxu0 %v951
        %v1390 = vpop.f32.mrf.mxu0
        %v1391 = vadd.f32 %v1230, %v1390
        %v1392 = vpop.f32.mrf.mxu0
        %v1393 = vadd.f32 %v1232, %v1392
        %1394 = vmatprep.mubr.f32.mxu0 %v956
        %1395 = vmatmul.mubr.f32.gmra.mxu0 %v955
        %v1396 = vpop.f32.mrf.mxu0
        %v1397 = vadd.f32 %v1236, %v1396
        %v1398 = vpop.f32.mrf.mxu0
        %v1399 = vadd.f32 %v1238, %v1398
        %1400 = vmatprep.mubr.f32.mxu0 %v960
        %1401 = vmatmul.mubr.f32.gmra.mxu0 %v959
        %v1402 = vpop.f32.mrf.mxu0
        %v1403 = vadd.f32 %v1242, %v1402
        %v1404 = vpop.f32.mrf.mxu0
        %v1405 = vadd.f32 %v1244, %v1404
        %1406 = vmatprep.mubr.f32.mxu0 %v964
        %1407 = vmatmul.mubr.f32.gmra.mxu0 %v963
        %v1408 = vpop.f32.mrf.mxu0
        %v1409 = vadd.f32 %v1248, %v1408
        %v1410 = vpop.f32.mrf.mxu0
        %v1411 = vadd.f32 %v1250, %v1410
        %1412 = vmatprep.mubr.f32.mxu0 %v968
        %1413 = vmatmul.mubr.f32.gmra.mxu0 %v967
        %v1414 = vpop.f32.mrf.mxu0
        %v1415 = vadd.f32 %v1254, %v1414
        %v1416 = vpop.f32.mrf.mxu0
        %v1417 = vadd.f32 %v1256, %v1416
        %1418 = vmatprep.mubr.f32.mxu0 %v972
        %1419 = vmatmul.mubr.f32.gmra.mxu0 %v971
        %v1420 = vpop.f32.mrf.mxu0
        %v1421 = vadd.f32 %v1260, %v1420
        %v1422 = vpop.f32.mrf.mxu0
        %v1423 = vadd.f32 %v1262, %v1422
        %1424 = vmatprep.mubr.f32.mxu0 %v976
        %1425 = vmatmul.mubr.f32.gmra.mxu0 %v975
        %v1426 = vpop.f32.mrf.mxu0
        %v1427 = vadd.f32 %v1266, %v1426
        %v1428 = vpop.f32.mrf.mxu0
        %v1429 = vadd.f32 %v1268, %v1428
        %1430 = vmatprep.mubr.f32.mxu0 %v980
        %1431 = vmatmul.mubr.f32.gmra.mxu0 %v979
        %v1432 = vpop.f32.mrf.mxu0
        %v1433 = vadd.f32 %v1272, %v1432
        %v1434 = vpop.f32.mrf.mxu0
        %v1435 = vadd.f32 %v1274, %v1434
        %1436 = vmatprep.mubr.f32.mxu0 %v984
        %1437 = vmatmul.mubr.f32.gmra.mxu0 %v983
        %v1438 = vpop.f32.mrf.mxu0
        %v1439 = vadd.f32 %v1278, %v1438
        %v1440 = vpop.f32.mrf.mxu0
        %v1441 = vadd.f32 %v1280, %v1440
        %1442 = vmatprep.mubr.f32.mxu0 %v988
        %1443 = vmatmul.mubr.f32.gmra.mxu0 %v987
        %v1444 = vpop.f32.mrf.mxu0
        %v1445 = vadd.f32 %v1284, %v1444
        %v1446 = vpop.f32.mrf.mxu0
        %v1447 = vadd.f32 %v1286, %v1446
        %1448 = vmatprep.mubr.f32.mxu0 %v992
        %1449 = vmatmul.mubr.f32.gmra.mxu0 %v991
        %v1450 = vpop.f32.mrf.mxu0
        %v1451 = vadd.f32 %v1290, %v1450
        %v1452 = vpop.f32.mrf.mxu0
        %v1453 = vadd.f32 %v1292, %v1452
        %1454 = vdwg.mxu0
        %v1455 = vmax.f32 %v1361, 0.0
        %v1456 = vmax.f32 %v1363, 0.0
        %v1457 = vmax.f32 %v1367, 0.0
        %v1458 = vmax.f32 %v1369, 0.0
        %v1459 = vmax.f32 %v1373, 0.0
        %v1460 = vmax.f32 %v1375, 0.0
        %v1461 = vmax.f32 %v1379, 0.0
        %v1462 = vmax.f32 %v1381, 0.0
        %v1463 = vmax.f32 %v1385, 0.0
        %v1464 = vmax.f32 %v1387, 0.0
        %v1465 = vmax.f32 %v1391, 0.0
        %v1466 = vmax.f32 %v1393, 0.0
        %v1467 = vmax.f32 %v1397, 0.0
        %v1468 = vmax.f32 %v1399, 0.0
        %v1469 = vmax.f32 %v1403, 0.0
        %v1470 = vmax.f32 %v1405, 0.0
        %v1471 = vmax.f32 %v1409, 0.0
        %v1472 = vmax.f32 %v1411, 0.0
        %v1473 = vmax.f32 %v1415, 0.0
        %v1474 = vmax.f32 %v1417, 0.0
        %v1475 = vmax.f32 %v1421, 0.0
        %v1476 = vmax.f32 %v1423, 0.0
        %v1477 = vmax.f32 %v1427, 0.0
        %v1478 = vmax.f32 %v1429, 0.0
        %v1479 = vmax.f32 %v1433, 0.0
        %v1480 = vmax.f32 %v1435, 0.0
        %v1481 = vmax.f32 %v1439, 0.0
        %v1482 = vmax.f32 %v1441, 0.0
        %v1483 = vmax.f32 %v1445, 0.0
        %v1484 = vmax.f32 %v1447, 0.0
        %v1485 = vmax.f32 %v1451, 0.0
        %v1486 = vmax.f32 %v1453, 0.0
        %v1487 = vld [vmem:[#allocation10] sm:$0xff]
        %v1488 = vld [vmem:[#allocation10 + $0x8] sm:$0xff]
        %v1489 = vld [vmem:[#allocation10 + $0x10] sm:$0xff]
        %v1490 = vld [vmem:[#allocation10 + $0x18] sm:$0xff]
        %v1491 = vld [vmem:[#allocation10 + $0x20] sm:$0xff]
        %v1492 = vld [vmem:[#allocation10 + $0x28] sm:$0xff]
        %v1493 = vld [vmem:[#allocation10 + $0x30] sm:$0xff]
        %v1494 = vld [vmem:[#allocation10 + $0x38] sm:$0xff]
        %v1495 = vld [vmem:[#allocation10 + $0x40] sm:$0xff]
        %v1496 = vld [vmem:[#allocation10 + $0x48] sm:$0xff]
        %v1497 = vld [vmem:[#allocation10 + $0x50] sm:$0xff]
        %v1498 = vld [vmem:[#allocation10 + $0x58] sm:$0xff]
        %v1499 = vld [vmem:[#allocation10 + $0x60] sm:$0xff]
        %v1500 = vld [vmem:[#allocation10 + $0x68] sm:$0xff]
        %v1501 = vld [vmem:[#allocation10 + $0x70] sm:$0xff]
        %v1502 = vld [vmem:[#allocation10 + $0x78] sm:$0xff]
        %v1503 = vld [vmem:[#allocation10 + $0x80] sm:$0xff]
        %v1504 = vld [vmem:[#allocation10 + $0x88] sm:$0xff]
        %v1505 = vld [vmem:[#allocation10 + $0x90] sm:$0xff]
        %v1506 = vld [vmem:[#allocation10 + $0x98] sm:$0xff]
        %v1507 = vld [vmem:[#allocation10 + $0xa0] sm:$0xff]
        %v1508 = vld [vmem:[#allocation10 + $0xa8] sm:$0xff]
        %v1509 = vld [vmem:[#allocation10 + $0xb0] sm:$0xff]
        %v1510 = vld [vmem:[#allocation10 + $0xb8] sm:$0xff]
        %v1511 = vld [vmem:[#allocation10 + $0xc0] sm:$0xff]
        %v1512 = vld [vmem:[#allocation10 + $0xc8] sm:$0xff]
        %v1513 = vld [vmem:[#allocation10 + $0xd0] sm:$0xff]
        %v1514 = vld [vmem:[#allocation10 + $0xd8] sm:$0xff]
        %v1515 = vld [vmem:[#allocation10 + $0xe0] sm:$0xff]
        %v1516 = vld [vmem:[#allocation10 + $0xe8] sm:$0xff]
        %v1517 = vld [vmem:[#allocation10 + $0xf0] sm:$0xff]
        %v1518 = vld [vmem:[#allocation10 + $0xf8] sm:$0xff]
        %v1519 = vld [vmem:[%s6] sm:$0x1]
        %v1521 = vlaneseq
        %v1522 = vshrl.u32 %v1521, 7
        %v1523 = vsub.s32 0, %v1522
        %v1524 = vrot.slane %v1519, %v1523
        %1526 = vmatprep.subr.mxu0 0.0
        %1527 = vmatpush1.msra.mxu0 %v1502
        %1528 = vmatprep.subr.mxu0 0.0
        %1529 = vmatpush1.msra.mxu0 %v1501
        %1530 = vmatprep.subr.mxu0 0.0
        %1531 = vmatpush1.msra.mxu0 %v1500
        %1532 = vmatprep.subr.mxu0 0.0
        %1533 = vmatpush1.msra.mxu0 %v1499
        %1534 = vmatprep.subr.mxu0 0.0
        %1535 = vmatpush1.msra.mxu0 %v1498
        %1536 = vmatprep.subr.mxu0 0.0
        %1537 = vmatpush1.msra.mxu0 %v1497
        %1538 = vmatprep.subr.mxu0 0.0
        %1539 = vmatpush1.msra.mxu0 %v1496
        %1540 = vmatprep.subr.mxu0 0.0
        %1541 = vmatpush1.msra.mxu0 %v1495
        %1542 = vmatprep.subr.mxu0 0.0
        %1543 = vmatpush1.msra.mxu0 %v1494
        %1544 = vmatprep.subr.mxu0 0.0
        %1545 = vmatpush1.msra.mxu0 %v1493
        %1546 = vmatprep.subr.mxu0 0.0
        %1547 = vmatpush1.msra.mxu0 %v1492
        %1548 = vmatprep.subr.mxu0 0.0
        %1549 = vmatpush1.msra.mxu0 %v1491
        %1550 = vmatprep.subr.mxu0 0.0
        %1551 = vmatpush1.msra.mxu0 %v1490
        %1552 = vmatprep.subr.mxu0 0.0
        %1553 = vmatpush1.msra.mxu0 %v1489
        %1554 = vmatprep.subr.mxu0 0.0
        %1555 = vmatpush1.msra.mxu0 %v1488
        %1556 = vmatprep.subr.mxu0 0.0
        %1557 = vmatpush1.msra.mxu0 %v1487
        %1558 = vmatprep.subr.mxu0 0.0
        %1559 = vmatpush2.msra.mxu0 %v1518
        %1560 = vmatprep.subr.mxu0 0.0
        %1561 = vmatpush2.msra.mxu0 %v1517
        %1562 = vmatprep.subr.mxu0 0.0
        %1563 = vmatpush2.msra.mxu0 %v1516
        %1564 = vmatprep.subr.mxu0 0.0
        %1565 = vmatpush2.msra.mxu0 %v1515
        %1566 = vmatprep.subr.mxu0 0.0
        %1567 = vmatpush2.msra.mxu0 %v1514
        %1568 = vmatprep.subr.mxu0 0.0
        %1569 = vmatpush2.msra.mxu0 %v1513
        %1570 = vmatprep.subr.mxu0 0.0
        %1571 = vmatpush2.msra.mxu0 %v1512
        %1572 = vmatprep.subr.mxu0 0.0
        %1573 = vmatpush2.msra.mxu0 %v1511
        %1574 = vmatprep.subr.mxu0 0.0
        %1575 = vmatpush2.msra.mxu0 %v1510
        %1576 = vmatprep.subr.mxu0 0.0
        %1577 = vmatpush2.msra.mxu0 %v1509
        %1578 = vmatprep.subr.mxu0 0.0
        %1579 = vmatpush2.msra.mxu0 %v1508
        %1580 = vmatprep.subr.mxu0 0.0
        %1581 = vmatpush2.msra.mxu0 %v1507
        %1582 = vmatprep.subr.mxu0 0.0
        %1583 = vmatpush2.msra.mxu0 %v1506
        %1584 = vmatprep.subr.mxu0 0.0
        %1585 = vmatpush2.msra.mxu0 %v1505
        %1586 = vmatprep.subr.mxu0 0.0
        %1587 = vmatpush2.msra.mxu0 %v1504
        %1588 = vmatprep.subr.mxu0 0.0
        %1589 = vmatpush2.msra.mxu0 %v1503
        %1590 = vmatprep.mubr.f32.mxu0 %v1456
        %1591 = vmatmul.mubr.f32.gmra.mxu0 %v1455
        %v1592 = vpop.f32.mrf.mxu0
        %v1593 = vadd.f32 %v1524, %v1592
        %v1594 = vpop.f32.mrf.mxu0
        %1595 = vmatprep.mubr.f32.mxu0 %v1458
        %1596 = vmatmul.mubr.f32.gmra.mxu0 %v1457
        %v1597 = vpop.f32.mrf.mxu0
        %v1598 = vadd.f32 %v1524, %v1597
        %v1599 = vpop.f32.mrf.mxu0
        %1600 = vmatprep.mubr.f32.mxu0 %v1460
        %1601 = vmatmul.mubr.f32.gmra.mxu0 %v1459
        %v1602 = vpop.f32.mrf.mxu0
        %v1603 = vadd.f32 %v1524, %v1602
        %v1604 = vpop.f32.mrf.mxu0
        %1605 = vmatprep.mubr.f32.mxu0 %v1462
        %1606 = vmatmul.mubr.f32.gmra.mxu0 %v1461
        %v1607 = vpop.f32.mrf.mxu0
        %v1608 = vadd.f32 %v1524, %v1607
        %v1609 = vpop.f32.mrf.mxu0
        %1610 = vmatprep.mubr.f32.mxu0 %v1464
        %1611 = vmatmul.mubr.f32.gmra.mxu0 %v1463
        %v1612 = vpop.f32.mrf.mxu0
        %v1613 = vadd.f32 %v1524, %v1612
        %v1614 = vpop.f32.mrf.mxu0
        %1615 = vmatprep.mubr.f32.mxu0 %v1466
        %1616 = vmatmul.mubr.f32.gmra.mxu0 %v1465
        %v1617 = vpop.f32.mrf.mxu0
        %v1618 = vadd.f32 %v1524, %v1617
        %v1619 = vpop.f32.mrf.mxu0
        %1620 = vmatprep.mubr.f32.mxu0 %v1468
        %1621 = vmatmul.mubr.f32.gmra.mxu0 %v1467
        %v1622 = vpop.f32.mrf.mxu0
        %v1623 = vadd.f32 %v1524, %v1622
        %v1624 = vpop.f32.mrf.mxu0
        %1625 = vmatprep.mubr.f32.mxu0 %v1470
        %1626 = vmatmul.mubr.f32.gmra.mxu0 %v1469
        %v1627 = vpop.f32.mrf.mxu0
        %v1628 = vadd.f32 %v1524, %v1627
        %v1629 = vpop.f32.mrf.mxu0
        %1630 = vmatprep.mubr.f32.mxu0 %v1472
        %1631 = vmatmul.mubr.f32.gmra.mxu0 %v1471
        %v1632 = vpop.f32.mrf.mxu0
        %v1633 = vadd.f32 %v1524, %v1632
        %v1634 = vpop.f32.mrf.mxu0
        %1635 = vmatprep.mubr.f32.mxu0 %v1474
        %1636 = vmatmul.mubr.f32.gmra.mxu0 %v1473
        %v1637 = vpop.f32.mrf.mxu0
        %v1638 = vadd.f32 %v1524, %v1637
        %v1639 = vpop.f32.mrf.mxu0
        %1640 = vmatprep.mubr.f32.mxu0 %v1476
        %1641 = vmatmul.mubr.f32.gmra.mxu0 %v1475
        %v1642 = vpop.f32.mrf.mxu0
        %v1643 = vadd.f32 %v1524, %v1642
        %v1644 = vpop.f32.mrf.mxu0
        %1645 = vmatprep.mubr.f32.mxu0 %v1478
        %1646 = vmatmul.mubr.f32.gmra.mxu0 %v1477
        %v1647 = vpop.f32.mrf.mxu0
        %v1648 = vadd.f32 %v1524, %v1647
        %v1649 = vpop.f32.mrf.mxu0
        %1650 = vmatprep.mubr.f32.mxu0 %v1480
        %1651 = vmatmul.mubr.f32.gmra.mxu0 %v1479
        %v1652 = vpop.f32.mrf.mxu0
        %v1653 = vadd.f32 %v1524, %v1652
        %v1654 = vpop.f32.mrf.mxu0
        %1655 = vmatprep.mubr.f32.mxu0 %v1482
        %1656 = vmatmul.mubr.f32.gmra.mxu0 %v1481
        %v1657 = vpop.f32.mrf.mxu0
        %v1658 = vadd.f32 %v1524, %v1657
        %v1659 = vpop.f32.mrf.mxu0
        %1660 = vmatprep.mubr.f32.mxu0 %v1484
        %1661 = vmatmul.mubr.f32.gmra.mxu0 %v1483
        %v1662 = vpop.f32.mrf.mxu0
        %v1663 = vadd.f32 %v1524, %v1662
        %v1664 = vpop.f32.mrf.mxu0
        %1665 = vmatprep.mubr.f32.mxu0 %v1486
        %1666 = vmatmul.mubr.f32.gmra.mxu0 %v1485
        %v1667 = vpop.f32.mrf.mxu0
        %v1668 = vadd.f32 %v1524, %v1667
        %v1669 = vpop.f32.mrf.mxu0
        %1670 = vdwg.mxu0
        %v1671 = vmax.f32 %v1593, 0.0
        %v1672 = vmax.f32 %v1598, 0.0
        %v1673 = vmax.f32 %v1603, 0.0
        %v1674 = vmax.f32 %v1608, 0.0
        %v1675 = vmax.f32 %v1613, 0.0
        %v1676 = vmax.f32 %v1618, 0.0
        %v1677 = vmax.f32 %v1623, 0.0
        %v1678 = vmax.f32 %v1628, 0.0
        %v1679 = vmax.f32 %v1633, 0.0
        %v1680 = vmax.f32 %v1638, 0.0
        %v1681 = vmax.f32 %v1643, 0.0
        %v1682 = vmax.f32 %v1648, 0.0
        %v1683 = vmax.f32 %v1653, 0.0
        %v1684 = vmax.f32 %v1658, 0.0
        %v1685 = vmax.f32 %v1663, 0.0
        %v1686 = vmax.f32 %v1668, 0.0
        %v1687 = vld [vmem:[#allocation11] sm:$0xff]
        %v1688 = vld [vmem:[#allocation11 + $0x8] sm:$0xff]
        %v1689 = vld [vmem:[#allocation11 + $0x10] sm:$0xff]
        %v1690 = vld [vmem:[#allocation11 + $0x18] sm:$0xff]
        %v1691 = vld [vmem:[#allocation11 + $0x20] sm:$0xff]
        %v1692 = vld [vmem:[#allocation11 + $0x28] sm:$0xff]
        %v1693 = vld [vmem:[#allocation11 + $0x30] sm:$0xff]
        %v1694 = vld [vmem:[#allocation11 + $0x38] sm:$0xff]
        %v1695 = vld [vmem:[#allocation11 + $0x40] sm:$0xff]
        %v1696 = vld [vmem:[#allocation11 + $0x48] sm:$0xff]
        %v1697 = vld [vmem:[#allocation11 + $0x50] sm:$0xff]
        %v1698 = vld [vmem:[#allocation11 + $0x58] sm:$0xff]
        %v1699 = vld [vmem:[#allocation11 + $0x60] sm:$0xff]
        %v1700 = vld [vmem:[#allocation11 + $0x68] sm:$0xff]
        %v1701 = vld [vmem:[#allocation11 + $0x70] sm:$0xff]
        %v1702 = vld [vmem:[#allocation11 + $0x78] sm:$0xff]
        %v1703 = vld [vmem:[%s8] sm:$0x1]
        %v1705 = vlaneseq
        %v1706 = vshrl.u32 %v1705, 7
        %v1707 = vsub.s32 0, %v1706
        %v1708 = vrot.slane %v1703, %v1707
        %1710 = vmatprep.subr.mxu0 0.0
        %1711 = vmatpush1.msra.mxu0 %v1702
        %1712 = vmatprep.subr.mxu0 0.0
        %1713 = vmatpush1.msra.mxu0 %v1701
        %1714 = vmatprep.subr.mxu0 0.0
        %1715 = vmatpush1.msra.mxu0 %v1700
        %1716 = vmatprep.subr.mxu0 0.0
        %1717 = vmatpush1.msra.mxu0 %v1699
        %1718 = vmatprep.subr.mxu0 0.0
        %1719 = vmatpush1.msra.mxu0 %v1698
        %1720 = vmatprep.subr.mxu0 0.0
        %1721 = vmatpush1.msra.mxu0 %v1697
        %1722 = vmatprep.subr.mxu0 0.0
        %1723 = vmatpush1.msra.mxu0 %v1696
        %1724 = vmatprep.subr.mxu0 0.0
        %1725 = vmatpush1.msra.mxu0 %v1695
        %1726 = vmatprep.subr.mxu0 0.0
        %1727 = vmatpush1.msra.mxu0 %v1694
        %1728 = vmatprep.subr.mxu0 0.0
        %1729 = vmatpush1.msra.mxu0 %v1693
        %1730 = vmatprep.subr.mxu0 0.0
        %1731 = vmatpush1.msra.mxu0 %v1692
        %1732 = vmatprep.subr.mxu0 0.0
        %1733 = vmatpush1.msra.mxu0 %v1691
        %1734 = vmatprep.subr.mxu0 0.0
        %1735 = vmatpush1.msra.mxu0 %v1690
        %1736 = vmatprep.subr.mxu0 0.0
        %1737 = vmatpush1.msra.mxu0 %v1689
        %1738 = vmatprep.subr.mxu0 0.0
        %1739 = vmatpush1.msra.mxu0 %v1688
        %1740 = vmatprep.subr.mxu0 0.0
        %1741 = vmatpush1.msra.mxu0 %v1687
        %1742 = vmatprep.subr.mxu0 0.0
        %1743 = vmatpush2.msra.mxu0 0.0
        %1744 = vmatprep.subr.mxu0 0.0
        %1745 = vmatpush2.msra.mxu0 0.0
        %1746 = vmatprep.subr.mxu0 0.0
        %1747 = vmatpush2.msra.mxu0 0.0
        %1748 = vmatprep.subr.mxu0 0.0
        %1749 = vmatpush2.msra.mxu0 0.0
        %1750 = vmatprep.subr.mxu0 0.0
        %1751 = vmatpush2.msra.mxu0 0.0
        %1752 = vmatprep.subr.mxu0 0.0
        %1753 = vmatpush2.msra.mxu0 0.0
        %1754 = vmatprep.subr.mxu0 0.0
        %1755 = vmatpush2.msra.mxu0 0.0
        %1756 = vmatprep.subr.mxu0 0.0
        %1757 = vmatpush2.msra.mxu0 0.0
        %1758 = vmatprep.subr.mxu0 0.0
        %1759 = vmatpush2.msra.mxu0 0.0
        %1760 = vmatprep.subr.mxu0 0.0
        %1761 = vmatpush2.msra.mxu0 0.0
        %1762 = vmatprep.subr.mxu0 0.0
        %1763 = vmatpush2.msra.mxu0 0.0
        %1764 = vmatprep.subr.mxu0 0.0
        %1765 = vmatpush2.msra.mxu0 0.0
        %1766 = vmatprep.subr.mxu0 0.0
        %1767 = vmatpush2.msra.mxu0 0.0
        %1768 = vmatprep.subr.mxu0 0.0
        %1769 = vmatpush2.msra.mxu0 0.0
        %1770 = vmatprep.subr.mxu0 0.0
        %1771 = vmatpush2.msra.mxu0 0.0
        %1772 = vmatprep.subr.mxu0 0.0
        %1773 = vmatpush2.msra.mxu0 0.0
        %1774 = vmatprep.mubr.f32.mxu0 0.0
        %1775 = vmatmul.mubr.f32.gmra.mxu0 %v1671
        %v1776 = vpop.f32.mrf.mxu0
        %v1777 = vadd.f32 %v1708, %v1776
        %v1778 = vpop.f32.mrf.mxu0
        %1779 = vmatprep.mubr.f32.mxu0 0.0
        %1780 = vmatmul.mubr.f32.gmra.mxu0 %v1672
        %v1781 = vpop.f32.mrf.mxu0
        %v1782 = vadd.f32 %v1708, %v1781
        %v1783 = vpop.f32.mrf.mxu0
        %1784 = vmatprep.mubr.f32.mxu0 0.0
        %1785 = vmatmul.mubr.f32.gmra.mxu0 %v1673
        %v1786 = vpop.f32.mrf.mxu0
        %v1787 = vadd.f32 %v1708, %v1786
        %v1788 = vpop.f32.mrf.mxu0
        %1789 = vmatprep.mubr.f32.mxu0 0.0
        %1790 = vmatmul.mubr.f32.gmra.mxu0 %v1674
        %v1791 = vpop.f32.mrf.mxu0
        %v1792 = vadd.f32 %v1708, %v1791
        %v1793 = vpop.f32.mrf.mxu0
        %1794 = vmatprep.mubr.f32.mxu0 0.0
        %1795 = vmatmul.mubr.f32.gmra.mxu0 %v1675
        %v1796 = vpop.f32.mrf.mxu0
        %v1797 = vadd.f32 %v1708, %v1796
        %v1798 = vpop.f32.mrf.mxu0
        %1799 = vmatprep.mubr.f32.mxu0 0.0
        %1800 = vmatmul.mubr.f32.gmra.mxu0 %v1676
        %v1801 = vpop.f32.mrf.mxu0
        %v1802 = vadd.f32 %v1708, %v1801
        %v1803 = vpop.f32.mrf.mxu0
        %1804 = vmatprep.mubr.f32.mxu0 0.0
        %1805 = vmatmul.mubr.f32.gmra.mxu0 %v1677
        %v1806 = vpop.f32.mrf.mxu0
        %v1807 = vadd.f32 %v1708, %v1806
        %v1808 = vpop.f32.mrf.mxu0
        %1809 = vmatprep.mubr.f32.mxu0 0.0
        %1810 = vmatmul.mubr.f32.gmra.mxu0 %v1678
        %v1811 = vpop.f32.mrf.mxu0
        %v1812 = vadd.f32 %v1708, %v1811
        %v1813 = vpop.f32.mrf.mxu0
        %1814 = vmatprep.mubr.f32.mxu0 0.0
        %1815 = vmatmul.mubr.f32.gmra.mxu0 %v1679
        %v1816 = vpop.f32.mrf.mxu0
        %v1817 = vadd.f32 %v1708, %v1816
        %v1818 = vpop.f32.mrf.mxu0
        %1819 = vmatprep.mubr.f32.mxu0 0.0
        %1820 = vmatmul.mubr.f32.gmra.mxu0 %v1680
        %v1821 = vpop.f32.mrf.mxu0
        %v1822 = vadd.f32 %v1708, %v1821
        %v1823 = vpop.f32.mrf.mxu0
        %1824 = vmatprep.mubr.f32.mxu0 0.0
        %1825 = vmatmul.mubr.f32.gmra.mxu0 %v1681
        %v1826 = vpop.f32.mrf.mxu0
        %v1827 = vadd.f32 %v1708, %v1826
        %v1828 = vpop.f32.mrf.mxu0
        %1829 = vmatprep.mubr.f32.mxu0 0.0
        %1830 = vmatmul.mubr.f32.gmra.mxu0 %v1682
        %v1831 = vpop.f32.mrf.mxu0
        %v1832 = vadd.f32 %v1708, %v1831
        %v1833 = vpop.f32.mrf.mxu0
        %1834 = vmatprep.mubr.f32.mxu0 0.0
        %1835 = vmatmul.mubr.f32.gmra.mxu0 %v1683
        %v1836 = vpop.f32.mrf.mxu0
        %v1837 = vadd.f32 %v1708, %v1836
        %v1838 = vpop.f32.mrf.mxu0
        %1839 = vmatprep.mubr.f32.mxu0 0.0
        %1840 = vmatmul.mubr.f32.gmra.mxu0 %v1684
        %v1841 = vpop.f32.mrf.mxu0
        %v1842 = vadd.f32 %v1708, %v1841
        %v1843 = vpop.f32.mrf.mxu0
        %1844 = vmatprep.mubr.f32.mxu0 0.0
        %1845 = vmatmul.mubr.f32.gmra.mxu0 %v1685
        %v1846 = vpop.f32.mrf.mxu0
        %v1847 = vadd.f32 %v1708, %v1846
        %v1848 = vpop.f32.mrf.mxu0
        %1849 = vmatprep.mubr.f32.mxu0 0.0
        %1850 = vmatmul.mubr.f32.gmra.mxu0 %v1686
        %v1851 = vpop.f32.mrf.mxu0
        %v1852 = vadd.f32 %v1708, %v1851
        %v1853 = vpop.f32.mrf.mxu0
        %1854 = vdwg.mxu0
        %1855 = vst [vmem:[%s422] sm:$0xff] %v1777
        %1856 = vst [vmem:[%s422 + $0x8] sm:$0xff] %v1782
        %1857 = vst [vmem:[%s422 + $0x10] sm:$0xff] %v1787
        %1858 = vst [vmem:[%s422 + $0x18] sm:$0xff] %v1792
        %1859 = vst [vmem:[%s422 + $0x20] sm:$0xff] %v1797
        %1860 = vst [vmem:[%s422 + $0x28] sm:$0xff] %v1802
        %1861 = vst [vmem:[%s422 + $0x30] sm:$0xff] %v1807
        %1862 = vst [vmem:[%s422 + $0x38] sm:$0xff] %v1812
        %1863 = vst [vmem:[%s422 + $0x40] sm:$0xff] %v1817
        %1864 = vst [vmem:[%s422 + $0x48] sm:$0xff] %v1822
        %1865 = vst [vmem:[%s422 + $0x50] sm:$0xff] %v1827
        %1866 = vst [vmem:[%s422 + $0x58] sm:$0xff] %v1832
        %1867 = vst [vmem:[%s422 + $0x60] sm:$0xff] %v1837
        %1868 = vst [vmem:[%s422 + $0x68] sm:$0xff] %v1842
        %1869 = vst [vmem:[%s422 + $0x70] sm:$0xff] %v1847
        %1870 = vst [vmem:[%s422 + $0x78] sm:$0xff] %v1852
        %s1871 = sand.u32 %s231, 1
        %s1872 = scalar_lea.sflag [#allocation4], %s1871
        %s1873 = sand.u32 %s231, 1
        %s1874 = smul.addr %s1873, 128
        %s1875 = scalar_lea.vmem [#allocation13], %s1874
        // Predicated region
        $region81: #{tpu_custom_call.1} parent=55 // pred_check
          %p1876 = pneg %p241
        $region82: #{tpu_custom_call.1} parent=55 // pred_check_branch
          %1878 = sbr.rel (%p1876) target = $region84
        $region83: #{tpu_custom_call.1} parent=55 // pred_region
          %s1879 = smul.u32 16, %s29
          %s1881 = ssub.s32 2048, 2048
          %1882 = vsyncadd %s1872, %s1881
          %s1883 = smul.addr %s1879, 128
          %s1884 = scalar_lea.hbm %s9, %s1883
          %s1885 = sshll.u32 %s1875, 4
          %s1886 = int_to_ptr.vmem [resolvable:$true] %s1885
          %1891 = dma.vmem_to_hbm [thread:$0]  %s1886, 2048, %s1884, %s1872, 128, 128, 8
        $region84: #{tpu_custom_call.1} parent=55 // pred_fallthru
          _
      $region56: #{tpu_custom_call.1} parent=5 // pred_fallthru
        _
      %p1892 = scmp.le.s32.totalorder 2, %s24
      // Predicated region
      $region85: #{tpu_custom_call.1} parent=5 // pred_check
        %p1893 = pneg %p1892
      $region86: #{tpu_custom_call.1} parent=5 // pred_check_branch
        %1895 = sbr.rel (%p1893) target = $region88
      $region87: #{tpu_custom_call.1} parent=5 // pred_region
        %s1896 = ssub.s32 %s24, 2
        // Predicated region
        $region89: #{tpu_custom_call.1} parent=87 // pred_check
          %p1897 = pneg %p247
        $region90: #{tpu_custom_call.1} parent=87 // pred_check_branch
          %1899 = sbr.rel (%p1897) target = $region92
        $region91: #{tpu_custom_call.1} parent=87 // pred_region
          %s1900 = sand.u32 %s232, 1
          %s1901 = scalar_lea.sflag [#allocation4], %s1900
          %s1902 = sand.u32 %s232, 1
          %s1903 = smul.addr %s1902, 128
          %s1904 = scalar_lea.vmem [#allocation13], %s1903
          %1905 = dma.done %s1901, 2048
        $region92: #{tpu_custom_call.1} parent=87 // pred_fallthru
          _
      $region88: #{tpu_custom_call.1} parent=5 // pred_fallthru
        _
    $region6: #{tpu_custom_call.1} parent=1 // loop_footer
      %s28 = sadd.s32 1, %s24
    $region7: #{tpu_custom_call.1} parent=1 // loop_footer_branch
      %23 = sbr.rel target = $region3
    $region8: #{tpu_custom_call.1} parent=1 // loop_exit
      _
    %1906 = vsyncpa [#allocation3], 1
    %s1907 = scalar_lea.sflag [#allocation3], 1
    %1908 = vsyncpa %s1907, 1
    %1909 = vsyncpa [#allocation6], 1
    %1910 = vsyncpa [#allocation9], 1
    %1911 = vsyncpa [#allocation12], 1
    %1912 = vsyncpa [#allocation4], 1
    %s1913 = scalar_lea.sflag [#allocation4], 1
    %1914 = vsyncpa %s1913, 1

</llo_original>
